<compile_context>
chip_gen: v7x
topology: tpu7x:2x2x1
jax: 0.10.0
libtpu: 0.0.40
codegen_flags: <defaults>
</compile_context>

<pallas_src>
import functools

import jax
import jax.numpy as jnp
from jax import lax
from jax.experimental import pallas as pl
from jax.experimental.pallas import tpu as pltpu


def _st_gcn_block_kernel(x_ref, a_ref, wg_ref, wtr_ref, b_ref, m_ref,
                         out_ref, xa_ref, s_ref, *, K, Kt, pad, V, vchunk):
    f32 = jnp.float32
    x = x_ref[...]                                    # (Cp, L) lane-dense f32
    Cp, L = x.shape
    C_out = out_ref.shape[0]
    n_sub = L // vchunk

    b = b_ref[...]                                    # (C_out, 2) folded biases
    bg, btr = b[:, 0:1], b[:, 1:2]

    # ---- graph convolution: per-subset lane-dense x @ (I kron A_k) written
    #      into 8-sublane-aligned slabs, then ONE stacked channel-mix dot
    #      (BN1 folded into wg).  No V-minor reshapes -> no relayouts. ----
    for k in range(K):
        a_k = a_ref[k]                                # (vchunk, vchunk) block-diag
        for s in range(n_sub):
            xa_ref[pl.ds(k * Cp, Cp), pl.ds(s * vchunk, vchunk)] = jnp.dot(
                x[:, s * vchunk:(s + 1) * vchunk], a_k,
                preferred_element_type=f32)
    y = jnp.dot(wg_ref[...], xa_ref[...], preferred_element_type=f32) + bg
    y = jnp.maximum(y, 0.0)                           # ReLU (BN1 already folded)

    # ---- temporal taps: lane rolls (XLU) * precomputed edge masks, written
    #      straight into aligned slabs; the residual input x goes in the last
    #      slab so the 1x1 residual conv fuses into the same dot. ----
    for dt in range(Kt):
        off = dt - pad                                # temporal offset of tap
        if off == 0:
            tap = y
        else:
            tap = pltpu.roll(y, (-off * V) % L, axis=1) * m_ref[pl.ds(dt, 1), :]
        s_ref[pl.ds(dt * C_out, C_out), :] = tap
    s_ref[pl.ds(Kt * C_out, Cp), :] = x

    # ---- ONE fused dot: temporal conv (BN2 folded) + residual (BNr folded) ----
    z = jnp.dot(wtr_ref[...], s_ref[...], preferred_element_type=f32) + btr
    out_ref[...] = jnp.maximum(z, 0.0).astype(out_ref.dtype)


def _fold_bn(gamma, beta, mean, var, eps=1e-5):
    scale = gamma / jnp.sqrt(var + eps)
    shift = beta - mean * scale
    return scale, shift


@functools.partial(jax.jit, static_argnames=("n_block",))
def st_gcn_block_hd_forward(x, edge, params, n_block=None):
    """x: (N, C_in, T, V) float32, edge: (K, V, V) float32 -> (N, C_out, T, V)."""
    N, C_in, T, V = x.shape
    K = edge.shape[0]
    Wg = params['gcn_w']                              # (K, C_out, C_in)
    C_out = Wg.shape[1]
    Wt = params['tcn_w']                              # (Kt, C_out, C_out)
    Kt = Wt.shape[0]
    pad = (Kt - 1) // 2

    # Grid sizing: a single grid step is fastest on 1-TC v5e/v6e (and for the
    # tiny demo even on v7x); pass n_block = N//2 on v7x for real batches so
    # both TensorCores get a "parallel" grid step each.
    if n_block is None:
        n_block = N
    assert N % n_block == 0, "n_block must divide N"
    assert pad < T, "temporal padding must be < T for the roll+mask scheme"
    TVl = T * V
    L_blk = n_block * TVl
    L_all = N * TVl
    if L_blk % 128 != 0 and L_blk != L_all:
        raise ValueError("n_block*T*V must be a multiple of 128 (or the full "
                         "lane extent) for lane-dense blocking")

    Cp = ((C_in + 7) // 8) * 8                        # pad input channels to a sublane tile

    # forward: x = self.gcn(x, self.A * edge)
    A_eff = (params['A'] * edge).astype(jnp.float32)

    # Fold eval-mode BatchNorms into the preceding conv weights/biases.
    g1, b1 = _fold_bn(*params['bn1'])
    g2, b2 = _fold_bn(*params['bn2'])
    gr, br0 = _fold_bn(*params['bnr'])
    Wg_f = g1[None, :, None] * Wg                     # (K, C_out, C_in)
    bg_f = g1 * params['gcn_b'] + b1
    Wt_f = g2[None, :, None] * Wt                     # (Kt, C_out, C_out)
    bt_f = g2 * params['tcn_b'] + b2
    Wr_f = gr[:, None] * params['res_w']              # (C_out, C_in)
    br_f = gr * params['res_b'] + br0

    # Stacked GCN channel-mix weight: Wg_cat[o, k*Cp + c] = Wg_f[k, o, c].
    Wg_cat = jnp.transpose(jnp.pad(Wg_f, ((0, 0), (0, 0), (0, Cp - C_in))),
                           (1, 0, 2)).reshape(C_out, K * Cp).astype(jnp.float32)
    # Fused tcn+residual weight [Wt2 | Wr]; columns match the (Kt taps, x) slabs.
    Wt2 = jnp.transpose(Wt_f, (1, 0, 2)).reshape(C_out, Kt * C_out)
    Wr_p = jnp.pad(Wr_f, ((0, 0), (0, Cp - C_in)))
    Wtr = jnp.concatenate([Wt2, Wr_p], axis=1).astype(jnp.float32)
    btr_f = bt_f + br_f
    biases = jnp.stack([bg_f, btr_f], axis=1).astype(jnp.float32)   # (C_out, 2)

    # Block-diagonal adjacency (I kron A_k): keeps the V contraction lane-dense
    # so the kernel never reshapes to a V-minor layout.  Built per sample when
    # T*V is 128-aligned, else per block.
    vchunk = TVl if TVl % 128 == 0 else L_blk
    eye = jnp.eye(vchunk // V, dtype=jnp.float32)
    A_hat = jnp.stack([jnp.kron(eye, A_eff[k]) for k in range(K)])   # (K, vchunk, vchunk)

    # Precomputed temporal edge masks (per tap); identical for every block
    # because each block holds whole samples contiguously on the lane axis.
    pos = jnp.arange(L_blk, dtype=jnp.int32) % TVl
    rows = []
    for dt in range(Kt):
        off = dt - pad
        if off > 0:
            rows.append(pos < TVl - off * V)
        elif off < 0:
            rows.append(pos >= -off * V)
        else:
            rows.append(jnp.ones((L_blk,), dtype=bool))
    tap_mask = jnp.stack(rows).astype(jnp.float32)                   # (Kt, L_blk)

    # Layout: channels on sublanes (zero-padded to 8), (N, T, V) on lanes.
    x_l = jnp.transpose(x, (1, 0, 2, 3)).reshape(C_in, L_all)
    x_l = jnp.pad(x_l, ((0, Cp - C_in), (0, 0))).astype(jnp.float32)

    # Explicit VMEM budget (inputs conservatively double-buffered + scratches);
    # keeps the kernel well inside v7x's 64 MiB as well as v5e/v6e's 128 MiB.
    est = 4 * (2 * (Cp + C_out) * L_blk
               + 2 * (K * vchunk * vchunk + C_out * (K * Cp)
                      + C_out * (Kt * C_out + Cp) + 2 * C_out + Kt * L_blk)
               + (K * Cp + Kt * C_out + Cp) * L_blk)
    vmem_limit = int(min(64 * 2**20, max(4 * est, 16 * 2**20)))

    kernel = functools.partial(_st_gcn_block_kernel, K=K, Kt=Kt, pad=pad, V=V,
                               vchunk=vchunk)
    full = lambda s: pl.BlockSpec(s, lambda i, _n=len(s): (0,) * _n)

    out_l = pl.pallas_call(
        kernel,
        out_shape=jax.ShapeDtypeStruct((C_out, L_all), x.dtype),
        grid=(N // n_block,),
        in_specs=[
            pl.BlockSpec((Cp, L_blk), lambda i: (0, i)),   # x (lane-dense)
            full((K, vchunk, vchunk)),                     # block-diag A * edge
            full((C_out, K * Cp)),                         # stacked gcn weight (BN1 folded)
            full((C_out, Kt * C_out + Cp)),                # fused tcn+residual weight
            full((C_out, 2)),                              # packed folded biases
            full((Kt, L_blk)),                             # temporal edge masks
        ],
        out_specs=pl.BlockSpec((C_out, L_blk), lambda i: (0, i)),
        scratch_shapes=[
            pltpu.VMEM((K * Cp, L_blk), jnp.float32),            # x @ (I kron A_k) slabs
            pltpu.VMEM((Kt * C_out + Cp, L_blk), jnp.float32),   # taps + residual slabs
        ],
        compiler_params=pltpu.CompilerParams(
            dimension_semantics=("parallel",),
            vmem_limit_bytes=vmem_limit),
    )(x_l, A_hat, Wg_cat, Wtr, biases, tap_mask)

    return jnp.transpose(out_l.reshape(C_out, N, T, V), (1, 0, 2, 3))


def reference_forward(x, edge, params):
    """Pure-JAX reference mirroring the module semantics (eval-mode BN)."""
    hp = lax.Precision.HIGHEST
    A_eff = (params['A'] * edge).astype(jnp.float32)
    Wg, bg = params['gcn_w'], params['gcn_b']
    Wt, bt = params['tcn_w'], params['tcn_b']
    Kt = Wt.shape[0]
    pad = (Kt - 1) // 2
    g1, b1 = _fold_bn(*params['bn1'])
    g2, b2 = _fold_bn(*params['bn2'])
    gr, bbr = _fold_bn(*params['bnr'])

    # gcn
    xa = jnp.einsum('nctv,kvw->nkctw', x, A_eff, precision=hp)
    y = jnp.einsum('koc,nkctw->notw', Wg, xa, precision=hp) + bg[None, :, None, None]
    # bn1 + relu
    y = jnp.maximum(y * g1[None, :, None, None] + b1[None, :, None, None], 0.0)
    # temporal conv, same padding, stride 1
    yp = jnp.pad(y, ((0, 0), (0, 0), (pad, pad), (0, 0)))
    T = x.shape[2]
    acc = bt[None, :, None, None]
    for dt in range(Kt):
        acc = acc + jnp.einsum('oc,nctv->notv', Wt[dt], yp[:, :, dt:dt + T, :],
                               precision=hp)
    z = acc * g2[None, :, None, None] + b2[None, :, None, None]
    # residual
    res = jnp.einsum('oc,nctv->notv', params['res_w'], x, precision=hp)
    res = res + params['res_b'][None, :, None, None]
    res = res * gr[None, :, None, None] + bbr[None, :, None, None]
    return jnp.maximum(z + res, 0.0)


def make_params(key, C_in, C_out, K, Kt, V):
    ks = jax.random.split(key, 20)
    def bn(k):
        k1, k2, k3, k4 = jax.random.split(k, 4)
        gamma = jax.random.uniform(k1, (C_out,), jnp.float32, 0.5, 1.5)
        beta = 0.1 * jax.random.normal(k2, (C_out,), jnp.float32)
        mean = 0.1 * jax.random.normal(k3, (C_out,), jnp.float32)
        var = jax.random.uniform(k4, (C_out,), jnp.float32, 0.5, 1.5)
        return (gamma, beta, mean, var)
    return {
        'A': 0.5 * jax.random.normal(ks[0], (K, V, V), jnp.float32),
        'gcn_w': 0.3 * jax.random.normal(ks[1], (K, C_out, C_in), jnp.float32),
        'gcn_b': 0.1 * jax.random.normal(ks[2], (C_out,), jnp.float32),
        'bn1': bn(ks[3]),
        'tcn_w': 0.2 * jax.random.normal(ks[4], (Kt, C_out, C_out), jnp.float32),
        'tcn_b': 0.1 * jax.random.normal(ks[5], (C_out,), jnp.float32),
        'bn2': bn(ks[6]),
        'res_w': 0.3 * jax.random.normal(ks[7], (C_out, C_in), jnp.float32),
        'res_b': 0.1 * jax.random.normal(ks[8], (C_out,), jnp.float32),
        'bnr': bn(ks[9]),
    }


if __name__ == "__main__":
    # Small shapes consistent with the module: N batch, C channels, T frames,
    # V graph nodes, K spatial kernel size, Kt (odd) temporal kernel size.
    N, C_in, C_out, T, V, K, Kt = 2, 4, 8, 16, 16, 3, 5

    key = jax.random.PRNGKey(0)
    k_x, k_e, k_p = jax.random.split(key, 3)
    x = jax.random.normal(k_x, (N, C_in, T, V), jnp.float32)
    edge = jax.random.uniform(k_e, (K, V, V), jnp.float32)
    params = make_params(k_p, C_in, C_out, K, Kt, V)

    # Default n_block=N -> a single grid step (best on 1-TC v5e/v6e and for
    # this tiny batch); on v7x with real batches call with n_block=N//2.
    out = jax.block_until_ready(st_gcn_block_hd_forward(x, edge, params))
    ref = jax.block_until_ready(reference_forward(x, edge, params))

    assert out.shape == (N, C_out, T, V), out.shape
    err = float(jnp.max(jnp.abs(out - ref)))
    assert jnp.allclose(out, ref, rtol=1e-4, atol=1e-4), err

    print("KERNEL_OK")
</pallas_src>

<mosaic_0001>
module attributes {stable_mosaic.version = 11 : i64} {
  func.func @_st_gcn_block_kernel(%arg0: i32, %arg1: memref<8x512xf32, #tpu.memory_space<vmem>>, %arg2: memref<3x256x256xf32, #tpu.memory_space<vmem>>, %arg3: memref<8x24xf32, #tpu.memory_space<vmem>>, %arg4: memref<8x48xf32, #tpu.memory_space<vmem>>, %arg5: memref<8x2xf32, #tpu.memory_space<vmem>>, %arg6: memref<5x512xf32, #tpu.memory_space<vmem>>, %arg7: memref<8x512xf32, #tpu.memory_space<vmem>>, %arg8: memref<24x512xf32, #tpu.memory_space<vmem>>, %arg9: memref<48x512xf32, #tpu.memory_space<vmem>>) attributes {dimension_semantics = [#tpu.dimension_semantics<parallel>], iteration_bounds = array<i64: 1>, scalar_prefetch = 0 : i64, scratch_operands = 2 : i64, tpu.core_type = #tpu.core_type<tc>, window_params = [{transform_indices = @transform_0, window_bounds = array<i64: 8, 512>}, {pipeline_mode = #tpu.pipeline_mode<synchronous>, transform_indices = @transform_1, window_bounds = array<i64: 3, 256, 256>}, {pipeline_mode = #tpu.pipeline_mode<synchronous>, transform_indices = @transform_2, window_bounds = array<i64: 8, 24>}, {pipeline_mode = #tpu.pipeline_mode<synchronous>, transform_indices = @transform_3, window_bounds = array<i64: 8, 48>}, {pipeline_mode = #tpu.pipeline_mode<synchronous>, transform_indices = @transform_4, window_bounds = array<i64: 8, 2>}, {pipeline_mode = #tpu.pipeline_mode<synchronous>, transform_indices = @transform_5, window_bounds = array<i64: 5, 512>}, {transform_indices = @transform_6, window_bounds = array<i64: 8, 512>}]} {
    %c0 = arith.constant 0 : index
    %c0_0 = arith.constant 0 : index
    %0 = vector.load %arg1[%c0, %c0_0] : memref<8x512xf32, #tpu.memory_space<vmem>>, vector<8x512xf32>
    %c0_1 = arith.constant 0 : index
    %c0_2 = arith.constant 0 : index
    %1 = vector.load %arg5[%c0_1, %c0_2] : memref<8x2xf32, #tpu.memory_space<vmem>>, vector<8x2xf32>
    %2 = vector.extract_strided_slice %1 {offsets = [0, 0], sizes = [8, 1], strides = [1, 1]} : vector<8x2xf32> to vector<8x1xf32>
    %3 = vector.extract_strided_slice %1 {offsets = [0, 1], sizes = [8, 1], strides = [1, 1]} : vector<8x2xf32> to vector<8x1xf32>
    %c0_3 = arith.constant 0 : index
    %c0_4 = arith.constant 0 : index
    %c0_5 = arith.constant 0 : index
    %4 = vector.load %arg2[%c0_3, %c0_4, %c0_5] : memref<3x256x256xf32, #tpu.memory_space<vmem>>, vector<1x256x256xf32>
    %5 = vector.shape_cast %4 : vector<1x256x256xf32> to vector<256x256xf32>
    %6 = vector.extract_strided_slice %0 {offsets = [0, 0], sizes = [8, 256], strides = [1, 1]} : vector<8x512xf32> to vector<8x256xf32>
    %cst = arith.constant dense<0.000000e+00> : vector<8x256xf32>
    %7 = tpu.matmul %6, %5, %cst {dimension_numbers = #tpu.dot_dimension_numbers<[1], [0], [0], [1], [0, 0, 1, 1], [], []>} : vector<8x256xf32>, vector<256x256xf32>, vector<8x256xf32> -> vector<8x256xf32>
    %c0_6 = arith.constant 0 : index
    %c0_7 = arith.constant 0 : index
    %8 = vector.load %arg8[%c0_6, %c0_7] : memref<24x512xf32, #tpu.memory_space<vmem>>, vector<8x256xf32>
    tpu.vector_store %arg8[%c0_6, %c0_7], %7 {strides = array<i32>} : memref<24x512xf32, #tpu.memory_space<vmem>>, vector<8x256xf32>,
    %9 = vector.extract_strided_slice %0 {offsets = [0, 256], sizes = [8, 256], strides = [1, 1]} : vector<8x512xf32> to vector<8x256xf32>
    %cst_8 = arith.constant dense<0.000000e+00> : vector<8x256xf32>
    %10 = tpu.matmul %9, %5, %cst_8 {dimension_numbers = #tpu.dot_dimension_numbers<[1], [0], [0], [1], [0, 0, 1, 1], [], []>} : vector<8x256xf32>, vector<256x256xf32>, vector<8x256xf32> -> vector<8x256xf32>
    %c0_9 = arith.constant 0 : index
    %c256 = arith.constant 256 : index
    %11 = vector.load %arg8[%c0_9, %c256] : memref<24x512xf32, #tpu.memory_space<vmem>>, vector<8x256xf32>
    tpu.vector_store %arg8[%c0_9, %c256], %10 {strides = array<i32>} : memref<24x512xf32, #tpu.memory_space<vmem>>, vector<8x256xf32>,
    %c1 = arith.constant 1 : index
    %c0_10 = arith.constant 0 : index
    %c0_11 = arith.constant 0 : index
    %12 = vector.load %arg2[%c1, %c0_10, %c0_11] : memref<3x256x256xf32, #tpu.memory_space<vmem>>, vector<1x256x256xf32>
    %13 = vector.shape_cast %12 : vector<1x256x256xf32> to vector<256x256xf32>
    %14 = vector.extract_strided_slice %0 {offsets = [0, 0], sizes = [8, 256], strides = [1, 1]} : vector<8x512xf32> to vector<8x256xf32>
    %cst_12 = arith.constant dense<0.000000e+00> : vector<8x256xf32>
    %15 = tpu.matmul %14, %13, %cst_12 {dimension_numbers = #tpu.dot_dimension_numbers<[1], [0], [0], [1], [0, 0, 1, 1], [], []>} : vector<8x256xf32>, vector<256x256xf32>, vector<8x256xf32> -> vector<8x256xf32>
    %c8 = arith.constant 8 : index
    %c0_13 = arith.constant 0 : index
    %16 = vector.load %arg8[%c8, %c0_13] : memref<24x512xf32, #tpu.memory_space<vmem>>, vector<8x256xf32>
    tpu.vector_store %arg8[%c8, %c0_13], %15 {strides = array<i32>} : memref<24x512xf32, #tpu.memory_space<vmem>>, vector<8x256xf32>,
    %17 = vector.extract_strided_slice %0 {offsets = [0, 256], sizes = [8, 256], strides = [1, 1]} : vector<8x512xf32> to vector<8x256xf32>
    %cst_14 = arith.constant dense<0.000000e+00> : vector<8x256xf32>
    %18 = tpu.matmul %17, %13, %cst_14 {dimension_numbers = #tpu.dot_dimension_numbers<[1], [0], [0], [1], [0, 0, 1, 1], [], []>} : vector<8x256xf32>, vector<256x256xf32>, vector<8x256xf32> -> vector<8x256xf32>
    %c8_15 = arith.constant 8 : index
    %c256_16 = arith.constant 256 : index
    %19 = vector.load %arg8[%c8_15, %c256_16] : memref<24x512xf32, #tpu.memory_space<vmem>>, vector<8x256xf32>
    tpu.vector_store %arg8[%c8_15, %c256_16], %18 {strides = array<i32>} : memref<24x512xf32, #tpu.memory_space<vmem>>, vector<8x256xf32>,
    %c2 = arith.constant 2 : index
    %c0_17 = arith.constant 0 : index
    %c0_18 = arith.constant 0 : index
    %20 = vector.load %arg2[%c2, %c0_17, %c0_18] : memref<3x256x256xf32, #tpu.memory_space<vmem>>, vector<1x256x256xf32>
    %21 = vector.shape_cast %20 : vector<1x256x256xf32> to vector<256x256xf32>
    %22 = vector.extract_strided_slice %0 {offsets = [0, 0], sizes = [8, 256], strides = [1, 1]} : vector<8x512xf32> to vector<8x256xf32>
    %cst_19 = arith.constant dense<0.000000e+00> : vector<8x256xf32>
    %23 = tpu.matmul %22, %21, %cst_19 {dimension_numbers = #tpu.dot_dimension_numbers<[1], [0], [0], [1], [0, 0, 1, 1], [], []>} : vector<8x256xf32>, vector<256x256xf32>, vector<8x256xf32> -> vector<8x256xf32>
    %c16 = arith.constant 16 : index
    %c0_20 = arith.constant 0 : index
    %24 = vector.load %arg8[%c16, %c0_20] : memref<24x512xf32, #tpu.memory_space<vmem>>, vector<8x256xf32>
    tpu.vector_store %arg8[%c16, %c0_20], %23 {strides = array<i32>} : memref<24x512xf32, #tpu.memory_space<vmem>>, vector<8x256xf32>,
    %25 = vector.extract_strided_slice %0 {offsets = [0, 256], sizes = [8, 256], strides = [1, 1]} : vector<8x512xf32> to vector<8x256xf32>
    %cst_21 = arith.constant dense<0.000000e+00> : vector<8x256xf32>
    %26 = tpu.matmul %25, %21, %cst_21 {dimension_numbers = #tpu.dot_dimension_numbers<[1], [0], [0], [1], [0, 0, 1, 1], [], []>} : vector<8x256xf32>, vector<256x256xf32>, vector<8x256xf32> -> vector<8x256xf32>
    %c16_22 = arith.constant 16 : index
    %c256_23 = arith.constant 256 : index
    %27 = vector.load %arg8[%c16_22, %c256_23] : memref<24x512xf32, #tpu.memory_space<vmem>>, vector<8x256xf32>
    tpu.vector_store %arg8[%c16_22, %c256_23], %26 {strides = array<i32>} : memref<24x512xf32, #tpu.memory_space<vmem>>, vector<8x256xf32>,
    %c0_24 = arith.constant 0 : index
    %c0_25 = arith.constant 0 : index
    %28 = vector.load %arg3[%c0_24, %c0_25] : memref<8x24xf32, #tpu.memory_space<vmem>>, vector<8x24xf32>
    %c0_26 = arith.constant 0 : index
    %c0_27 = arith.constant 0 : index
    %29 = vector.load %arg8[%c0_26, %c0_27] : memref<24x512xf32, #tpu.memory_space<vmem>>, vector<24x512xf32>
    %cst_28 = arith.constant dense<0.000000e+00> : vector<8x512xf32>
    %30 = tpu.matmul %28, %29, %cst_28 {dimension_numbers = #tpu.dot_dimension_numbers<[1], [0], [0], [1], [0, 0, 1, 1], [], []>} : vector<8x24xf32>, vector<24x512xf32>, vector<8x512xf32> -> vector<8x512xf32>
    %31 = vector.broadcast %2 : vector<8x1xf32> to vector<8x512xf32>
    %32 = arith.addf %30, %31 : vector<8x512xf32>
    %cst_29 = arith.constant 0.000000e+00 : f32
    %33 = vector.broadcast %cst_29 : f32 to vector<8x512xf32>
    %34 = arith.maximumf %32, %33 : vector<8x512xf32>
    %c32_i32 = arith.constant 32 : i32
    %35 = tpu.dynamic_rotate %34 by %c32_i32 dim 1 : vector<8x512xf32>, i32 -> vector<8x512xf32>
    %c0_30 = arith.constant 0 : index
    %c0_31 = arith.constant 0 : index
    %36 = vector.load %arg6[%c0_30, %c0_31] : memref<5x512xf32, #tpu.memory_space<vmem>>, vector<1x512xf32>
    %37 = vector.broadcast %36 : vector<1x512xf32> to vector<8x512xf32>
    %38 = arith.mulf %35, %37 : vector<8x512xf32>
    %c0_32 = arith.constant 0 : index
    %c0_33 = arith.constant 0 : index
    %39 = vector.load %arg9[%c0_32, %c0_33] : memref<48x512xf32, #tpu.memory_space<vmem>>, vector<8x512xf32>
    tpu.vector_store %arg9[%c0_32, %c0_33], %38 {strides = array<i32>} : memref<48x512xf32, #tpu.memory_space<vmem>>, vector<8x512xf32>,
    %c16_i32 = arith.constant 16 : i32
    %40 = tpu.dynamic_rotate %34 by %c16_i32 dim 1 : vector<8x512xf32>, i32 -> vector<8x512xf32>
    %c1_34 = arith.constant 1 : index
    %c0_35 = arith.constant 0 : index
    %41 = vector.load %arg6[%c1_34, %c0_35] : memref<5x512xf32, #tpu.memory_space<vmem>>, vector<1x512xf32>
    %42 = vector.broadcast %41 : vector<1x512xf32> to vector<8x512xf32>
    %43 = arith.mulf %40, %42 : vector<8x512xf32>
    %c8_36 = arith.constant 8 : index
    %c0_37 = arith.constant 0 : index
    %44 = vector.load %arg9[%c8_36, %c0_37] : memref<48x512xf32, #tpu.memory_space<vmem>>, vector<8x512xf32>
    tpu.vector_store %arg9[%c8_36, %c0_37], %43 {strides = array<i32>} : memref<48x512xf32, #tpu.memory_space<vmem>>, vector<8x512xf32>,
    %c16_38 = arith.constant 16 : index
    %c0_39 = arith.constant 0 : index
    %45 = vector.load %arg9[%c16_38, %c0_39] : memref<48x512xf32, #tpu.memory_space<vmem>>, vector<8x512xf32>
    tpu.vector_store %arg9[%c16_38, %c0_39], %34 {strides = array<i32>} : memref<48x512xf32, #tpu.memory_space<vmem>>, vector<8x512xf32>,
    %c496_i32 = arith.constant 496 : i32
    %46 = tpu.dynamic_rotate %34 by %c496_i32 dim 1 : vector<8x512xf32>, i32 -> vector<8x512xf32>
    %c3 = arith.constant 3 : index
    %c0_40 = arith.constant 0 : index
    %47 = vector.load %arg6[%c3, %c0_40] : memref<5x512xf32, #tpu.memory_space<vmem>>, vector<1x512xf32>
    %48 = vector.broadcast %47 : vector<1x512xf32> to vector<8x512xf32>
    %49 = arith.mulf %46, %48 : vector<8x512xf32>
    %c24 = arith.constant 24 : index
    %c0_41 = arith.constant 0 : index
    %50 = vector.load %arg9[%c24, %c0_41] : memref<48x512xf32, #tpu.memory_space<vmem>>, vector<8x512xf32>
    tpu.vector_store %arg9[%c24, %c0_41], %49 {strides = array<i32>} : memref<48x512xf32, #tpu.memory_space<vmem>>, vector<8x512xf32>,
    %c480_i32 = arith.constant 480 : i32
    %51 = tpu.dynamic_rotate %34 by %c480_i32 dim 1 : vector<8x512xf32>, i32 -> vector<8x512xf32>
    %c4 = arith.constant 4 : index
    %c0_42 = arith.constant 0 : index
    %52 = vector.load %arg6[%c4, %c0_42] : memref<5x512xf32, #tpu.memory_space<vmem>>, vector<1x512xf32>
    %53 = vector.broadcast %52 : vector<1x512xf32> to vector<8x512xf32>
    %54 = arith.mulf %51, %53 : vector<8x512xf32>
    %c32 = arith.constant 32 : index
    %c0_43 = arith.constant 0 : index
    %55 = vector.load %arg9[%c32, %c0_43] : memref<48x512xf32, #tpu.memory_space<vmem>>, vector<8x512xf32>
    tpu.vector_store %arg9[%c32, %c0_43], %54 {strides = array<i32>} : memref<48x512xf32, #tpu.memory_space<vmem>>, vector<8x512xf32>,
    %c40 = arith.constant 40 : index
    %c0_44 = arith.constant 0 : index
    %56 = vector.load %arg9[%c40, %c0_44] : memref<48x512xf32, #tpu.memory_space<vmem>>, vector<8x512xf32>
    tpu.vector_store %arg9[%c40, %c0_44], %0 {strides = array<i32>} : memref<48x512xf32, #tpu.memory_space<vmem>>, vector<8x512xf32>,
    %c0_45 = arith.constant 0 : index
    %c0_46 = arith.constant 0 : index
    %57 = vector.load %arg4[%c0_45, %c0_46] : memref<8x48xf32, #tpu.memory_space<vmem>>, vector<8x48xf32>
    %c0_47 = arith.constant 0 : index
    %c0_48 = arith.constant 0 : index
    %58 = vector.load %arg9[%c0_47, %c0_48] : memref<48x512xf32, #tpu.memory_space<vmem>>, vector<48x512xf32>
    %cst_49 = arith.constant dense<0.000000e+00> : vector<8x512xf32>
    %59 = tpu.matmul %57, %58, %cst_49 {dimension_numbers = #tpu.dot_dimension_numbers<[1], [0], [0], [1], [0, 0, 1, 1], [], []>} : vector<8x48xf32>, vector<48x512xf32>, vector<8x512xf32> -> vector<8x512xf32>
    %60 = vector.broadcast %3 : vector<8x1xf32> to vector<8x512xf32>
    %61 = arith.addf %59, %60 : vector<8x512xf32>
    %cst_50 = arith.constant 0.000000e+00 : f32
    %62 = vector.broadcast %cst_50 : f32 to vector<8x512xf32>
    %63 = arith.maximumf %61, %62 : vector<8x512xf32>
    %c0_51 = arith.constant 0 : index
    %c0_52 = arith.constant 0 : index
    %64 = vector.load %arg7[%c0_51, %c0_52] : memref<8x512xf32, #tpu.memory_space<vmem>>, vector<8x512xf32>
    tpu.vector_store %arg7[%c0_51, %c0_52], %63 {strides = array<i32>} : memref<8x512xf32, #tpu.memory_space<vmem>>, vector<8x512xf32>,
    return
  }
  func.func @transform_0(%arg0: i32) -> (i32, i32) {
    %c0_i32 = arith.constant 0 : i32
    %c0_i32_0 = arith.constant 0 : i32
    return %c0_i32, %arg0 : i32, i32
  }
  func.func @transform_1(%arg0: i32) -> (i32, i32, i32) {
    %c0_i32 = arith.constant 0 : i32
    %c0_i32_0 = arith.constant 0 : i32
    %c0_i32_1 = arith.constant 0 : i32
    %c0_i32_2 = arith.constant 0 : i32
    return %c0_i32, %c0_i32_0, %c0_i32_1 : i32, i32, i32
  }
  func.func @transform_2(%arg0: i32) -> (i32, i32) {
    %c0_i32 = arith.constant 0 : i32
    %c0_i32_0 = arith.constant 0 : i32
    %c0_i32_1 = arith.constant 0 : i32
    return %c0_i32, %c0_i32_0 : i32, i32
  }
  func.func @transform_3(%arg0: i32) -> (i32, i32) {
    %c0_i32 = arith.constant 0 : i32
    %c0_i32_0 = arith.constant 0 : i32
    %c0_i32_1 = arith.constant 0 : i32
    return %c0_i32, %c0_i32_0 : i32, i32
  }
  func.func @transform_4(%arg0: i32) -> (i32, i32) {
    %c0_i32 = arith.constant 0 : i32
    %c0_i32_0 = arith.constant 0 : i32
    %c0_i32_1 = arith.constant 0 : i32
    return %c0_i32, %c0_i32_0 : i32, i32
  }
  func.func @transform_5(%arg0: i32) -> (i32, i32) {
    %c0_i32 = arith.constant 0 : i32
    %c0_i32_0 = arith.constant 0 : i32
    %c0_i32_1 = arith.constant 0 : i32
    return %c0_i32, %c0_i32_0 : i32, i32
  }
  func.func @transform_6(%arg0: i32) -> (i32, i32) {
    %c0_i32 = arith.constant 0 : i32
    %c0_i32_0 = arith.constant 0 : i32
    return %c0_i32, %arg0 : i32, i32
  }
}

</mosaic_0001>

<llo_original>
// kernel: mul.33
$region0: #{mul.33}
  #allocation4 [shape = 's32[1]{0}', space=sflag, size = 0x4, scoped, tag = 'scoped memory for mul.33']
  %s0 = inlined_call_operand.hbm [shape: f32[3,16,16], index: 0, kind: input, shape index: {}]
  %s1 = inlined_call_operand.hbm [shape: f32[3,16,16], index: 1, kind: input, shape index: {}]
  %s2 = inlined_call_operand.vmem [shape: f32[3,16,16], index: 2, kind: output, shape index: {}]
  $region1: #{mul.33} parent=0
    #allocation0 [shape = 'u8[24576]{0}', space=vmem, size = 0x6000, scoped, tag = 'operand span for operand 0']
    #allocation1 [shape = 's32[1]{0}', space=sflag, size = 0x4, scoped, tag = 'scoped memory for mul.33']
    #allocation2 [shape = 'u8[24576]{0}', space=vmem, size = 0x6000, scoped, tag = 'operand span for operand 1']
    #allocation3 [shape = 's32[1]{0}', space=sflag, size = 0x4, scoped, tag = 'scoped memory for mul.33']
    %3 = vsyncpa [#allocation1], 0
    %4 = vsyncpa [#allocation3], 0
    %s6 = ssub.s32 768, 768
    %7 = vsyncadd [#allocation1], %s6
    %s8 = sshll.u32 [#allocation0], 4
    %s9 = int_to_ptr.vmem [resolvable:$true] %s8
    %14 = dma.hbm_to_vmem [thread:$0]  %s0, 768, %s9, [#allocation1], 128, 128, 8
    %s16 = ssub.s32 768, 768
    %17 = vsyncadd [#allocation3], %s16
    %s18 = sshll.u32 [#allocation2], 4
    %s19 = int_to_ptr.vmem [resolvable:$true] %s18
    %24 = dma.hbm_to_vmem [thread:$0]  %s1, 768, %s19, [#allocation3], 128, 128, 8
    %25 = dma.done [#allocation1], 768
    %26 = dma.done [#allocation3], 768
    %v27 = vld [vmem:[#allocation0] sm:$0xff]
    %v28 = vld [vmem:[#allocation2] sm:$0xff]
    %29 = xla_tuple %v27, %v28
    %30 = xla_tuple %29
    %v31 = vmul.f32 %v27, %v28
    %32 = xla_tuple %v31
    %33 = vst [vmem:[%s2] sm:$0xff] %v31
    %s34 = scalar_lea.vmem [#allocation0], 16
    %v35 = vld [vmem:[%s34] sm:$0xff]
    %s36 = scalar_lea.vmem [#allocation2], 16
    %v37 = vld [vmem:[%s36] sm:$0xff]
    %38 = xla_tuple %v35, %v37
    %39 = xla_tuple %38
    %v40 = vmul.f32 %v35, %v37
    %41 = xla_tuple %v40
    %s42 = scalar_lea.vmem %s2, 16
    %43 = vst [vmem:[%s42] sm:$0xff] %v40
    %s44 = scalar_lea.vmem [#allocation0], 32
    %v45 = vld [vmem:[%s44] sm:$0xff]
    %s46 = scalar_lea.vmem [#allocation2], 32
    %v47 = vld [vmem:[%s46] sm:$0xff]
    %48 = xla_tuple %v45, %v47
    %49 = xla_tuple %48
    %v50 = vmul.f32 %v45, %v47
    %51 = xla_tuple %v50
    %s52 = scalar_lea.vmem %s2, 32
    %53 = vst [vmem:[%s52] sm:$0xff] %v50
    %s54 = scalar_lea.vmem [#allocation0], 8
    %v55 = vld [vmem:[%s54] sm:$0xff]
    %s56 = scalar_lea.vmem [#allocation2], 8
    %v57 = vld [vmem:[%s56] sm:$0xff]
    %58 = xla_tuple %v55, %v57
    %59 = xla_tuple %58
    %v60 = vmul.f32 %v55, %v57
    %61 = xla_tuple %v60
    %s62 = scalar_lea.vmem %s2, 8
    %63 = vst [vmem:[%s62] sm:$0xff] %v60
    %s64 = scalar_lea.vmem [#allocation0], 24
    %v65 = vld [vmem:[%s64] sm:$0xff]
    %s66 = scalar_lea.vmem [#allocation2], 24
    %v67 = vld [vmem:[%s66] sm:$0xff]
    %68 = xla_tuple %v65, %v67
    %69 = xla_tuple %68
    %v70 = vmul.f32 %v65, %v67
    %71 = xla_tuple %v70
    %s72 = scalar_lea.vmem %s2, 24
    %73 = vst [vmem:[%s72] sm:$0xff] %v70
    %s74 = scalar_lea.vmem [#allocation0], 40
    %v75 = vld [vmem:[%s74] sm:$0xff]
    %s76 = scalar_lea.vmem [#allocation2], 40
    %v77 = vld [vmem:[%s76] sm:$0xff]
    %78 = xla_tuple %v75, %v77
    %79 = xla_tuple %78
    %v80 = vmul.f32 %v75, %v77
    %81 = xla_tuple %v80
    %s82 = scalar_lea.vmem %s2, 40
    %83 = vst [vmem:[%s82] sm:$0xff] %v80
    %84 = vsyncpa [#allocation1], 1
    %85 = vsyncpa [#allocation3], 1

// kernel: st_gcn_block_hd_forward.1
$region0: #{st_gcn_block_hd_forward.1}
  #allocation0 [shape = 'u32[]', space=smem, size = 0x4, offset = 0x4, fixed_abs, tag = 'smem constant byte address 0x4 - core index']
  #allocation1 [shape = 'u32[144,128]{1,0:T(1,128)}', space=vmem, size = 0x12000, scoped, tag = 'internal scratch']
  #allocation2 [shape = 'f32[24,512]{1,0:T(8,128)}', space=vmem, size = 0xc000, scoped, tag = 'scratch operand']
  #allocation3 [shape = 'f32[48,512]{1,0:T(8,128)}', space=vmem, size = 0x18000, scoped, tag = 'scratch operand']
  %s0 = inlined_call_operand.vmem [shape: f32[8,512], index: 0, kind: input, shape index: {}]
  %s1 = inlined_call_operand.vmem [shape: f32[3,256,256], index: 1, kind: input, shape index: {}]
  %s2 = inlined_call_operand.vmem [shape: f32[8,24], index: 2, kind: input, shape index: {}]
  %s3 = inlined_call_operand.vmem [shape: f32[8,48], index: 3, kind: input, shape index: {}]
  %s4 = inlined_call_operand.vmem [shape: f32[8,2], index: 4, kind: input, shape index: {}]
  %s5 = inlined_call_operand.vmem [shape: f32[5,512], index: 5, kind: input, shape index: {}]
  %s6 = inlined_call_operand.vmem [shape: f32[8,512], index: 6, kind: output, shape index: {}]
  %s7 = sld [smem:[#allocation0]]
  $region34: #{st_gcn_block_hd_forward.1} parent=0
    _
  %s9 = ssub.s32 1, %s7
  %s10 = scalar_select 0, %s9, %s7
  // Predicated region
  $region2: #{st_gcn_block_hd_forward.1} parent=0 // pred_check
    _
  $region3: #{st_gcn_block_hd_forward.1} parent=0 // pred_check_branch
    %12 = sbr.rel (0) target = $region5
  $region4: #{st_gcn_block_hd_forward.1} parent=0 // pred_region
    _
  $region5: #{st_gcn_block_hd_forward.1} parent=0 // pred_fallthru
    _
  // Predicated region
  $region6: #{st_gcn_block_hd_forward.1} parent=0 // pred_check
    _
  $region7: #{st_gcn_block_hd_forward.1} parent=0 // pred_check_branch
    %14 = sbr.rel (0) target = $region9
  $region8: #{st_gcn_block_hd_forward.1} parent=0 // pred_region
    _
  $region9: #{st_gcn_block_hd_forward.1} parent=0 // pred_fallthru
    _
  // Predicated region
  $region10: #{st_gcn_block_hd_forward.1} parent=0 // pred_check
    _
  $region11: #{st_gcn_block_hd_forward.1} parent=0 // pred_check_branch
    %16 = sbr.rel (0) target = $region13
  $region12: #{st_gcn_block_hd_forward.1} parent=0 // pred_region
    _
  $region13: #{st_gcn_block_hd_forward.1} parent=0 // pred_fallthru
    _
  // Predicated region
  $region14: #{st_gcn_block_hd_forward.1} parent=0 // pred_check
    _
  $region15: #{st_gcn_block_hd_forward.1} parent=0 // pred_check_branch
    %18 = sbr.rel (0) target = $region17
  $region16: #{st_gcn_block_hd_forward.1} parent=0 // pred_region
    _
  $region17: #{st_gcn_block_hd_forward.1} parent=0 // pred_fallthru
    _
  // Predicated region
  $region18: #{st_gcn_block_hd_forward.1} parent=0 // pred_check
    _
  $region19: #{st_gcn_block_hd_forward.1} parent=0 // pred_check_branch
    %20 = sbr.rel (0) target = $region21
  $region20: #{st_gcn_block_hd_forward.1} parent=0 // pred_region
    _
  $region21: #{st_gcn_block_hd_forward.1} parent=0 // pred_fallthru
    _
  // Predicated region
  $region22: #{st_gcn_block_hd_forward.1} parent=0 // pred_check
    _
  $region23: #{st_gcn_block_hd_forward.1} parent=0 // pred_check_branch
    %22 = sbr.rel (0) target = $region25
  $region24: #{st_gcn_block_hd_forward.1} parent=0 // pred_region
    _
  $region25: #{st_gcn_block_hd_forward.1} parent=0 // pred_fallthru
    _
  %v23 = vld [vmem:[%s0] sm:$0xff]
  %v24 = vld [vmem:[%s0 + $0x8] sm:$0xff]
  %v25 = vld [vmem:[%s0 + $0x10] sm:$0xff]
  %v26 = vld [vmem:[%s0 + $0x18] sm:$0xff]
  %v27 = vld [vmem:[%s4] sm:$0xff]
  %v28 = vld [vmem:[%s1] sm:$0xff]
  %v29 = vld [vmem:[%s1 + $0x8] sm:$0xff]
  %v30 = vld [vmem:[%s1 + $0x10] sm:$0xff]
  %v31 = vld [vmem:[%s1 + $0x18] sm:$0xff]
  %v32 = vld [vmem:[%s1 + $0x20] sm:$0xff]
  %v33 = vld [vmem:[%s1 + $0x28] sm:$0xff]
  %v34 = vld [vmem:[%s1 + $0x30] sm:$0xff]
  %v35 = vld [vmem:[%s1 + $0x38] sm:$0xff]
  %v36 = vld [vmem:[%s1 + $0x40] sm:$0xff]
  %v37 = vld [vmem:[%s1 + $0x48] sm:$0xff]
  %v38 = vld [vmem:[%s1 + $0x50] sm:$0xff]
  %v39 = vld [vmem:[%s1 + $0x58] sm:$0xff]
  %v40 = vld [vmem:[%s1 + $0x60] sm:$0xff]
  %v41 = vld [vmem:[%s1 + $0x68] sm:$0xff]
  %v42 = vld [vmem:[%s1 + $0x70] sm:$0xff]
  %v43 = vld [vmem:[%s1 + $0x78] sm:$0xff]
  %v44 = vld [vmem:[%s1 + $0x80] sm:$0xff]
  %v45 = vld [vmem:[%s1 + $0x88] sm:$0xff]
  %v46 = vld [vmem:[%s1 + $0x90] sm:$0xff]
  %v47 = vld [vmem:[%s1 + $0x98] sm:$0xff]
  %v48 = vld [vmem:[%s1 + $0xa0] sm:$0xff]
  %v49 = vld [vmem:[%s1 + $0xa8] sm:$0xff]
  %v50 = vld [vmem:[%s1 + $0xb0] sm:$0xff]
  %v51 = vld [vmem:[%s1 + $0xb8] sm:$0xff]
  %v52 = vld [vmem:[%s1 + $0xc0] sm:$0xff]
  %v53 = vld [vmem:[%s1 + $0xc8] sm:$0xff]
  %v54 = vld [vmem:[%s1 + $0xd0] sm:$0xff]
  %v55 = vld [vmem:[%s1 + $0xd8] sm:$0xff]
  %v56 = vld [vmem:[%s1 + $0xe0] sm:$0xff]
  %v57 = vld [vmem:[%s1 + $0xe8] sm:$0xff]
  %v58 = vld [vmem:[%s1 + $0xf0] sm:$0xff]
  %v59 = vld [vmem:[%s1 + $0xf8] sm:$0xff]
  %v60 = vld [vmem:[%s1 + $0x100] sm:$0xff]
  %v61 = vld [vmem:[%s1 + $0x108] sm:$0xff]
  %v62 = vld [vmem:[%s1 + $0x110] sm:$0xff]
  %v63 = vld [vmem:[%s1 + $0x118] sm:$0xff]
  %v64 = vld [vmem:[%s1 + $0x120] sm:$0xff]
  %v65 = vld [vmem:[%s1 + $0x128] sm:$0xff]
  %v66 = vld [vmem:[%s1 + $0x130] sm:$0xff]
  %v67 = vld [vmem:[%s1 + $0x138] sm:$0xff]
  %v68 = vld [vmem:[%s1 + $0x140] sm:$0xff]
  %v69 = vld [vmem:[%s1 + $0x148] sm:$0xff]
  %v70 = vld [vmem:[%s1 + $0x150] sm:$0xff]
  %v71 = vld [vmem:[%s1 + $0x158] sm:$0xff]
  %v72 = vld [vmem:[%s1 + $0x160] sm:$0xff]
  %v73 = vld [vmem:[%s1 + $0x168] sm:$0xff]
  %v74 = vld [vmem:[%s1 + $0x170] sm:$0xff]
  %v75 = vld [vmem:[%s1 + $0x178] sm:$0xff]
  %v76 = vld [vmem:[%s1 + $0x180] sm:$0xff]
  %v77 = vld [vmem:[%s1 + $0x188] sm:$0xff]
  %v78 = vld [vmem:[%s1 + $0x190] sm:$0xff]
  %v79 = vld [vmem:[%s1 + $0x198] sm:$0xff]
  %v80 = vld [vmem:[%s1 + $0x1a0] sm:$0xff]
  %v81 = vld [vmem:[%s1 + $0x1a8] sm:$0xff]
  %v82 = vld [vmem:[%s1 + $0x1b0] sm:$0xff]
  %v83 = vld [vmem:[%s1 + $0x1b8] sm:$0xff]
  %v84 = vld [vmem:[%s1 + $0x1c0] sm:$0xff]
  %v85 = vld [vmem:[%s1 + $0x1c8] sm:$0xff]
  %v86 = vld [vmem:[%s1 + $0x1d0] sm:$0xff]
  %v87 = vld [vmem:[%s1 + $0x1d8] sm:$0xff]
  %v88 = vld [vmem:[%s1 + $0x1e0] sm:$0xff]
  %v89 = vld [vmem:[%s1 + $0x1e8] sm:$0xff]
  %v90 = vld [vmem:[%s1 + $0x1f0] sm:$0xff]
  %v91 = vld [vmem:[%s1 + $0x1f8] sm:$0xff]
  %92 = vmatprep.subr.mxu0 %v29
  %93 = vmatpush1.msra.mxu0 %v28
  %94 = vmatprep.subr.mxu0 %v31
  %95 = vmatpush1.msra.mxu0 %v30
  %96 = vmatprep.subr.mxu0 %v33
  %97 = vmatpush1.msra.mxu0 %v32
  %98 = vmatprep.subr.mxu0 %v35
  %99 = vmatpush1.msra.mxu0 %v34
  %100 = vmatprep.subr.mxu0 %v37
  %101 = vmatpush1.msra.mxu0 %v36
  %102 = vmatprep.subr.mxu0 %v39
  %103 = vmatpush1.msra.mxu0 %v38
  %104 = vmatprep.subr.mxu0 %v41
  %105 = vmatpush1.msra.mxu0 %v40
  %106 = vmatprep.subr.mxu0 %v43
  %107 = vmatpush1.msra.mxu0 %v42
  %108 = vmatprep.subr.mxu0 %v45
  %109 = vmatpush1.msra.mxu0 %v44
  %110 = vmatprep.subr.mxu0 %v47
  %111 = vmatpush1.msra.mxu0 %v46
  %112 = vmatprep.subr.mxu0 %v49
  %113 = vmatpush1.msra.mxu0 %v48
  %114 = vmatprep.subr.mxu0 %v51
  %115 = vmatpush1.msra.mxu0 %v50
  %116 = vmatprep.subr.mxu0 %v53
  %117 = vmatpush1.msra.mxu0 %v52
  %118 = vmatprep.subr.mxu0 %v55
  %119 = vmatpush1.msra.mxu0 %v54
  %120 = vmatprep.subr.mxu0 %v57
  %121 = vmatpush1.msra.mxu0 %v56
  %122 = vmatprep.subr.mxu0 %v59
  %123 = vmatpush1.msra.mxu0 %v58
  %124 = vmatprep.subr.mxu0 %v61
  %125 = vmatpush1.msra.mxu0 %v60
  %126 = vmatprep.subr.mxu0 %v63
  %127 = vmatpush1.msra.mxu0 %v62
  %128 = vmatprep.subr.mxu0 %v65
  %129 = vmatpush1.msra.mxu0 %v64
  %130 = vmatprep.subr.mxu0 %v67
  %131 = vmatpush1.msra.mxu0 %v66
  %132 = vmatprep.subr.mxu0 %v69
  %133 = vmatpush1.msra.mxu0 %v68
  %134 = vmatprep.subr.mxu0 %v71
  %135 = vmatpush1.msra.mxu0 %v70
  %136 = vmatprep.subr.mxu0 %v73
  %137 = vmatpush1.msra.mxu0 %v72
  %138 = vmatprep.subr.mxu0 %v75
  %139 = vmatpush1.msra.mxu0 %v74
  %140 = vmatprep.subr.mxu0 %v77
  %141 = vmatpush1.msra.mxu0 %v76
  %142 = vmatprep.subr.mxu0 %v79
  %143 = vmatpush1.msra.mxu0 %v78
  %144 = vmatprep.subr.mxu0 %v81
  %145 = vmatpush1.msra.mxu0 %v80
  %146 = vmatprep.subr.mxu0 %v83
  %147 = vmatpush1.msra.mxu0 %v82
  %148 = vmatprep.subr.mxu0 %v85
  %149 = vmatpush1.msra.mxu0 %v84
  %150 = vmatprep.subr.mxu0 %v87
  %151 = vmatpush1.msra.mxu0 %v86
  %152 = vmatprep.subr.mxu0 %v89
  %153 = vmatpush1.msra.mxu0 %v88
  %154 = vmatprep.subr.mxu0 %v91
  %155 = vmatpush1.msra.mxu0 %v90
  %156 = vmatprep.mubr.f32.mxu0 %v24
  %157 = vmatmul.mubr.f32.gmra.mrb[0].mxu0 %v23
  %v158 = vpop.f32.mrb[0].mxu0
  %v159 = vadd.f32 0.0, %v158
  %v160 = vpop.f32.mrb[0].mxu0
  %v161 = vadd.f32 0.0, %v160
  %162 = vdwg.mxu0
  %163 = vst [vmem:[#allocation2] sm:$0xff] %v159
  %164 = vst [vmem:[#allocation2 + $0x8] sm:$0xff] %v161
  %165 = vmatprep.subr.mxu0 %v29
  %166 = vmatpush1.msra.mxu0 %v28
  %167 = vmatprep.subr.mxu0 %v31
  %168 = vmatpush1.msra.mxu0 %v30
  %169 = vmatprep.subr.mxu0 %v33
  %170 = vmatpush1.msra.mxu0 %v32
  %171 = vmatprep.subr.mxu0 %v35
  %172 = vmatpush1.msra.mxu0 %v34
  %173 = vmatprep.subr.mxu0 %v37
  %174 = vmatpush1.msra.mxu0 %v36
  %175 = vmatprep.subr.mxu0 %v39
  %176 = vmatpush1.msra.mxu0 %v38
  %177 = vmatprep.subr.mxu0 %v41
  %178 = vmatpush1.msra.mxu0 %v40
  %179 = vmatprep.subr.mxu0 %v43
  %180 = vmatpush1.msra.mxu0 %v42
  %181 = vmatprep.subr.mxu0 %v45
  %182 = vmatpush1.msra.mxu0 %v44
  %183 = vmatprep.subr.mxu0 %v47
  %184 = vmatpush1.msra.mxu0 %v46
  %185 = vmatprep.subr.mxu0 %v49
  %186 = vmatpush1.msra.mxu0 %v48
  %187 = vmatprep.subr.mxu0 %v51
  %188 = vmatpush1.msra.mxu0 %v50
  %189 = vmatprep.subr.mxu0 %v53
  %190 = vmatpush1.msra.mxu0 %v52
  %191 = vmatprep.subr.mxu0 %v55
  %192 = vmatpush1.msra.mxu0 %v54
  %193 = vmatprep.subr.mxu0 %v57
  %194 = vmatpush1.msra.mxu0 %v56
  %195 = vmatprep.subr.mxu0 %v59
  %196 = vmatpush1.msra.mxu0 %v58
  %197 = vmatprep.subr.mxu0 %v61
  %198 = vmatpush1.msra.mxu0 %v60
  %199 = vmatprep.subr.mxu0 %v63
  %200 = vmatpush1.msra.mxu0 %v62
  %201 = vmatprep.subr.mxu0 %v65
  %202 = vmatpush1.msra.mxu0 %v64
  %203 = vmatprep.subr.mxu0 %v67
  %204 = vmatpush1.msra.mxu0 %v66
  %205 = vmatprep.subr.mxu0 %v69
  %206 = vmatpush1.msra.mxu0 %v68
  %207 = vmatprep.subr.mxu0 %v71
  %208 = vmatpush1.msra.mxu0 %v70
  %209 = vmatprep.subr.mxu0 %v73
  %210 = vmatpush1.msra.mxu0 %v72
  %211 = vmatprep.subr.mxu0 %v75
  %212 = vmatpush1.msra.mxu0 %v74
  %213 = vmatprep.subr.mxu0 %v77
  %214 = vmatpush1.msra.mxu0 %v76
  %215 = vmatprep.subr.mxu0 %v79
  %216 = vmatpush1.msra.mxu0 %v78
  %217 = vmatprep.subr.mxu0 %v81
  %218 = vmatpush1.msra.mxu0 %v80
  %219 = vmatprep.subr.mxu0 %v83
  %220 = vmatpush1.msra.mxu0 %v82
  %221 = vmatprep.subr.mxu0 %v85
  %222 = vmatpush1.msra.mxu0 %v84
  %223 = vmatprep.subr.mxu0 %v87
  %224 = vmatpush1.msra.mxu0 %v86
  %225 = vmatprep.subr.mxu0 %v89
  %226 = vmatpush1.msra.mxu0 %v88
  %227 = vmatprep.subr.mxu0 %v91
  %228 = vmatpush1.msra.mxu0 %v90
  %229 = vmatprep.mubr.f32.mxu0 %v26
  %230 = vmatmul.mubr.f32.gmra.mrb[0].mxu0 %v25
  %v231 = vpop.f32.mrb[0].mxu0
  %v232 = vadd.f32 0.0, %v231
  %v233 = vpop.f32.mrb[0].mxu0
  %v234 = vadd.f32 0.0, %v233
  %235 = vdwg.mxu0
  %236 = vst [vmem:[#allocation2 + $0x10] sm:$0xff] %v232
  %237 = vst [vmem:[#allocation2 + $0x18] sm:$0xff] %v234
  %s238 = scalar_lea.vmem %s1, 512
  %v239 = vld [vmem:[%s238] sm:$0xff]
  %v240 = vld [vmem:[%s238 + $0x8] sm:$0xff]
  %v241 = vld [vmem:[%s238 + $0x10] sm:$0xff]
  %v242 = vld [vmem:[%s238 + $0x18] sm:$0xff]
  %v243 = vld [vmem:[%s238 + $0x20] sm:$0xff]
  %v244 = vld [vmem:[%s238 + $0x28] sm:$0xff]
  %v245 = vld [vmem:[%s238 + $0x30] sm:$0xff]
  %v246 = vld [vmem:[%s238 + $0x38] sm:$0xff]
  %v247 = vld [vmem:[%s238 + $0x40] sm:$0xff]
  %v248 = vld [vmem:[%s238 + $0x48] sm:$0xff]
  %v249 = vld [vmem:[%s238 + $0x50] sm:$0xff]
  %v250 = vld [vmem:[%s238 + $0x58] sm:$0xff]
  %v251 = vld [vmem:[%s238 + $0x60] sm:$0xff]
  %v252 = vld [vmem:[%s238 + $0x68] sm:$0xff]
  %v253 = vld [vmem:[%s238 + $0x70] sm:$0xff]
  %v254 = vld [vmem:[%s238 + $0x78] sm:$0xff]
  %v255 = vld [vmem:[%s238 + $0x80] sm:$0xff]
  %v256 = vld [vmem:[%s238 + $0x88] sm:$0xff]
  %v257 = vld [vmem:[%s238 + $0x90] sm:$0xff]
  %v258 = vld [vmem:[%s238 + $0x98] sm:$0xff]
  %v259 = vld [vmem:[%s238 + $0xa0] sm:$0xff]
  %v260 = vld [vmem:[%s238 + $0xa8] sm:$0xff]
  %v261 = vld [vmem:[%s238 + $0xb0] sm:$0xff]
  %v262 = vld [vmem:[%s238 + $0xb8] sm:$0xff]
  %v263 = vld [vmem:[%s238 + $0xc0] sm:$0xff]
  %v264 = vld [vmem:[%s238 + $0xc8] sm:$0xff]
  %v265 = vld [vmem:[%s238 + $0xd0] sm:$0xff]
  %v266 = vld [vmem:[%s238 + $0xd8] sm:$0xff]
  %v267 = vld [vmem:[%s238 + $0xe0] sm:$0xff]
  %v268 = vld [vmem:[%s238 + $0xe8] sm:$0xff]
  %v269 = vld [vmem:[%s238 + $0xf0] sm:$0xff]
  %v270 = vld [vmem:[%s238 + $0xf8] sm:$0xff]
  %v271 = vld [vmem:[%s238 + $0x100] sm:$0xff]
  %v272 = vld [vmem:[%s238 + $0x108] sm:$0xff]
  %v273 = vld [vmem:[%s238 + $0x110] sm:$0xff]
  %v274 = vld [vmem:[%s238 + $0x118] sm:$0xff]
  %v275 = vld [vmem:[%s238 + $0x120] sm:$0xff]
  %v276 = vld [vmem:[%s238 + $0x128] sm:$0xff]
  %v277 = vld [vmem:[%s238 + $0x130] sm:$0xff]
  %v278 = vld [vmem:[%s238 + $0x138] sm:$0xff]
  %v279 = vld [vmem:[%s238 + $0x140] sm:$0xff]
  %v280 = vld [vmem:[%s238 + $0x148] sm:$0xff]
  %v281 = vld [vmem:[%s238 + $0x150] sm:$0xff]
  %v282 = vld [vmem:[%s238 + $0x158] sm:$0xff]
  %v283 = vld [vmem:[%s238 + $0x160] sm:$0xff]
  %v284 = vld [vmem:[%s238 + $0x168] sm:$0xff]
  %v285 = vld [vmem:[%s238 + $0x170] sm:$0xff]
  %v286 = vld [vmem:[%s238 + $0x178] sm:$0xff]
  %v287 = vld [vmem:[%s238 + $0x180] sm:$0xff]
  %v288 = vld [vmem:[%s238 + $0x188] sm:$0xff]
  %v289 = vld [vmem:[%s238 + $0x190] sm:$0xff]
  %v290 = vld [vmem:[%s238 + $0x198] sm:$0xff]
  %v291 = vld [vmem:[%s238 + $0x1a0] sm:$0xff]
  %v292 = vld [vmem:[%s238 + $0x1a8] sm:$0xff]
  %v293 = vld [vmem:[%s238 + $0x1b0] sm:$0xff]
  %v294 = vld [vmem:[%s238 + $0x1b8] sm:$0xff]
  %v295 = vld [vmem:[%s238 + $0x1c0] sm:$0xff]
  %v296 = vld [vmem:[%s238 + $0x1c8] sm:$0xff]
  %v297 = vld [vmem:[%s238 + $0x1d0] sm:$0xff]
  %v298 = vld [vmem:[%s238 + $0x1d8] sm:$0xff]
  %v299 = vld [vmem:[%s238 + $0x1e0] sm:$0xff]
  %v300 = vld [vmem:[%s238 + $0x1e8] sm:$0xff]
  %v301 = vld [vmem:[%s238 + $0x1f0] sm:$0xff]
  %v302 = vld [vmem:[%s238 + $0x1f8] sm:$0xff]
  %303 = vmatprep.subr.mxu0 %v240
  %304 = vmatpush1.msra.mxu0 %v239
  %305 = vmatprep.subr.mxu0 %v242
  %306 = vmatpush1.msra.mxu0 %v241
  %307 = vmatprep.subr.mxu0 %v244
  %308 = vmatpush1.msra.mxu0 %v243
  %309 = vmatprep.subr.mxu0 %v246
  %310 = vmatpush1.msra.mxu0 %v245
  %311 = vmatprep.subr.mxu0 %v248
  %312 = vmatpush1.msra.mxu0 %v247
  %313 = vmatprep.subr.mxu0 %v250
  %314 = vmatpush1.msra.mxu0 %v249
  %315 = vmatprep.subr.mxu0 %v252
  %316 = vmatpush1.msra.mxu0 %v251
  %317 = vmatprep.subr.mxu0 %v254
  %318 = vmatpush1.msra.mxu0 %v253
  %319 = vmatprep.subr.mxu0 %v256
  %320 = vmatpush1.msra.mxu0 %v255
  %321 = vmatprep.subr.mxu0 %v258
  %322 = vmatpush1.msra.mxu0 %v257
  %323 = vmatprep.subr.mxu0 %v260
  %324 = vmatpush1.msra.mxu0 %v259
  %325 = vmatprep.subr.mxu0 %v262
  %326 = vmatpush1.msra.mxu0 %v261
  %327 = vmatprep.subr.mxu0 %v264
  %328 = vmatpush1.msra.mxu0 %v263
  %329 = vmatprep.subr.mxu0 %v266
  %330 = vmatpush1.msra.mxu0 %v265
  %331 = vmatprep.subr.mxu0 %v268
  %332 = vmatpush1.msra.mxu0 %v267
  %333 = vmatprep.subr.mxu0 %v270
  %334 = vmatpush1.msra.mxu0 %v269
  %335 = vmatprep.subr.mxu0 %v272
  %336 = vmatpush1.msra.mxu0 %v271
  %337 = vmatprep.subr.mxu0 %v274
  %338 = vmatpush1.msra.mxu0 %v273
  %339 = vmatprep.subr.mxu0 %v276
  %340 = vmatpush1.msra.mxu0 %v275
  %341 = vmatprep.subr.mxu0 %v278
  %342 = vmatpush1.msra.mxu0 %v277
  %343 = vmatprep.subr.mxu0 %v280
  %344 = vmatpush1.msra.mxu0 %v279
  %345 = vmatprep.subr.mxu0 %v282
  %346 = vmatpush1.msra.mxu0 %v281
  %347 = vmatprep.subr.mxu0 %v284
  %348 = vmatpush1.msra.mxu0 %v283
  %349 = vmatprep.subr.mxu0 %v286
  %350 = vmatpush1.msra.mxu0 %v285
  %351 = vmatprep.subr.mxu0 %v288
  %352 = vmatpush1.msra.mxu0 %v287
  %353 = vmatprep.subr.mxu0 %v290
  %354 = vmatpush1.msra.mxu0 %v289
  %355 = vmatprep.subr.mxu0 %v292
  %356 = vmatpush1.msra.mxu0 %v291
  %357 = vmatprep.subr.mxu0 %v294
  %358 = vmatpush1.msra.mxu0 %v293
  %359 = vmatprep.subr.mxu0 %v296
  %360 = vmatpush1.msra.mxu0 %v295
  %361 = vmatprep.subr.mxu0 %v298
  %362 = vmatpush1.msra.mxu0 %v297
  %363 = vmatprep.subr.mxu0 %v300
  %364 = vmatpush1.msra.mxu0 %v299
  %365 = vmatprep.subr.mxu0 %v302
  %366 = vmatpush1.msra.mxu0 %v301
  %367 = vmatprep.mubr.f32.mxu0 %v24
  %368 = vmatmul.mubr.f32.gmra.mrb[0].mxu0 %v23
  %v369 = vpop.f32.mrb[0].mxu0
  %v370 = vadd.f32 0.0, %v369
  %v371 = vpop.f32.mrb[0].mxu0
  %v372 = vadd.f32 0.0, %v371
  %373 = vdwg.mxu0
  %374 = vst [vmem:[#allocation2 + $0x20] sm:$0xff] %v370
  %375 = vst [vmem:[#allocation2 + $0x28] sm:$0xff] %v372
  %376 = vmatprep.subr.mxu0 %v240
  %377 = vmatpush1.msra.mxu0 %v239
  %378 = vmatprep.subr.mxu0 %v242
  %379 = vmatpush1.msra.mxu0 %v241
  %380 = vmatprep.subr.mxu0 %v244
  %381 = vmatpush1.msra.mxu0 %v243
  %382 = vmatprep.subr.mxu0 %v246
  %383 = vmatpush1.msra.mxu0 %v245
  %384 = vmatprep.subr.mxu0 %v248
  %385 = vmatpush1.msra.mxu0 %v247
  %386 = vmatprep.subr.mxu0 %v250
  %387 = vmatpush1.msra.mxu0 %v249
  %388 = vmatprep.subr.mxu0 %v252
  %389 = vmatpush1.msra.mxu0 %v251
  %390 = vmatprep.subr.mxu0 %v254
  %391 = vmatpush1.msra.mxu0 %v253
  %392 = vmatprep.subr.mxu0 %v256
  %393 = vmatpush1.msra.mxu0 %v255
  %394 = vmatprep.subr.mxu0 %v258
  %395 = vmatpush1.msra.mxu0 %v257
  %396 = vmatprep.subr.mxu0 %v260
  %397 = vmatpush1.msra.mxu0 %v259
  %398 = vmatprep.subr.mxu0 %v262
  %399 = vmatpush1.msra.mxu0 %v261
  %400 = vmatprep.subr.mxu0 %v264
  %401 = vmatpush1.msra.mxu0 %v263
  %402 = vmatprep.subr.mxu0 %v266
  %403 = vmatpush1.msra.mxu0 %v265
  %404 = vmatprep.subr.mxu0 %v268
  %405 = vmatpush1.msra.mxu0 %v267
  %406 = vmatprep.subr.mxu0 %v270
  %407 = vmatpush1.msra.mxu0 %v269
  %408 = vmatprep.subr.mxu0 %v272
  %409 = vmatpush1.msra.mxu0 %v271
  %410 = vmatprep.subr.mxu0 %v274
  %411 = vmatpush1.msra.mxu0 %v273
  %412 = vmatprep.subr.mxu0 %v276
  %413 = vmatpush1.msra.mxu0 %v275
  %414 = vmatprep.subr.mxu0 %v278
  %415 = vmatpush1.msra.mxu0 %v277
  %416 = vmatprep.subr.mxu0 %v280
  %417 = vmatpush1.msra.mxu0 %v279
  %418 = vmatprep.subr.mxu0 %v282
  %419 = vmatpush1.msra.mxu0 %v281
  %420 = vmatprep.subr.mxu0 %v284
  %421 = vmatpush1.msra.mxu0 %v283
  %422 = vmatprep.subr.mxu0 %v286
  %423 = vmatpush1.msra.mxu0 %v285
  %424 = vmatprep.subr.mxu0 %v288
  %425 = vmatpush1.msra.mxu0 %v287
  %426 = vmatprep.subr.mxu0 %v290
  %427 = vmatpush1.msra.mxu0 %v289
  %428 = vmatprep.subr.mxu0 %v292
  %429 = vmatpush1.msra.mxu0 %v291
  %430 = vmatprep.subr.mxu0 %v294
  %431 = vmatpush1.msra.mxu0 %v293
  %432 = vmatprep.subr.mxu0 %v296
  %433 = vmatpush1.msra.mxu0 %v295
  %434 = vmatprep.subr.mxu0 %v298
  %435 = vmatpush1.msra.mxu0 %v297
  %436 = vmatprep.subr.mxu0 %v300
  %437 = vmatpush1.msra.mxu0 %v299
  %438 = vmatprep.subr.mxu0 %v302
  %439 = vmatpush1.msra.mxu0 %v301
  %440 = vmatprep.mubr.f32.mxu0 %v26
  %441 = vmatmul.mubr.f32.gmra.mrb[0].mxu0 %v25
  %v442 = vpop.f32.mrb[0].mxu0
  %v443 = vadd.f32 0.0, %v442
  %v444 = vpop.f32.mrb[0].mxu0
  %v445 = vadd.f32 0.0, %v444
  %446 = vdwg.mxu0
  %447 = vst [vmem:[#allocation2 + $0x30] sm:$0xff] %v443
  %448 = vst [vmem:[#allocation2 + $0x38] sm:$0xff] %v445
  %s449 = scalar_lea.vmem %s1, 1024
  %v450 = vld [vmem:[%s449] sm:$0xff]
  %v451 = vld [vmem:[%s449 + $0x8] sm:$0xff]
  %v452 = vld [vmem:[%s449 + $0x10] sm:$0xff]
  %v453 = vld [vmem:[%s449 + $0x18] sm:$0xff]
  %v454 = vld [vmem:[%s449 + $0x20] sm:$0xff]
  %v455 = vld [vmem:[%s449 + $0x28] sm:$0xff]
  %v456 = vld [vmem:[%s449 + $0x30] sm:$0xff]
  %v457 = vld [vmem:[%s449 + $0x38] sm:$0xff]
  %v458 = vld [vmem:[%s449 + $0x40] sm:$0xff]
  %v459 = vld [vmem:[%s449 + $0x48] sm:$0xff]
  %v460 = vld [vmem:[%s449 + $0x50] sm:$0xff]
  %v461 = vld [vmem:[%s449 + $0x58] sm:$0xff]
  %v462 = vld [vmem:[%s449 + $0x60] sm:$0xff]
  %v463 = vld [vmem:[%s449 + $0x68] sm:$0xff]
  %v464 = vld [vmem:[%s449 + $0x70] sm:$0xff]
  %v465 = vld [vmem:[%s449 + $0x78] sm:$0xff]
  %v466 = vld [vmem:[%s449 + $0x80] sm:$0xff]
  %v467 = vld [vmem:[%s449 + $0x88] sm:$0xff]
  %v468 = vld [vmem:[%s449 + $0x90] sm:$0xff]
  %v469 = vld [vmem:[%s449 + $0x98] sm:$0xff]
  %v470 = vld [vmem:[%s449 + $0xa0] sm:$0xff]
  %v471 = vld [vmem:[%s449 + $0xa8] sm:$0xff]
  %v472 = vld [vmem:[%s449 + $0xb0] sm:$0xff]
  %v473 = vld [vmem:[%s449 + $0xb8] sm:$0xff]
  %v474 = vld [vmem:[%s449 + $0xc0] sm:$0xff]
  %v475 = vld [vmem:[%s449 + $0xc8] sm:$0xff]
  %v476 = vld [vmem:[%s449 + $0xd0] sm:$0xff]
  %v477 = vld [vmem:[%s449 + $0xd8] sm:$0xff]
  %v478 = vld [vmem:[%s449 + $0xe0] sm:$0xff]
  %v479 = vld [vmem:[%s449 + $0xe8] sm:$0xff]
  %v480 = vld [vmem:[%s449 + $0xf0] sm:$0xff]
  %v481 = vld [vmem:[%s449 + $0xf8] sm:$0xff]
  %v482 = vld [vmem:[%s449 + $0x100] sm:$0xff]
  %v483 = vld [vmem:[%s449 + $0x108] sm:$0xff]
  %v484 = vld [vmem:[%s449 + $0x110] sm:$0xff]
  %v485 = vld [vmem:[%s449 + $0x118] sm:$0xff]
  %v486 = vld [vmem:[%s449 + $0x120] sm:$0xff]
  %v487 = vld [vmem:[%s449 + $0x128] sm:$0xff]
  %v488 = vld [vmem:[%s449 + $0x130] sm:$0xff]
  %v489 = vld [vmem:[%s449 + $0x138] sm:$0xff]
  %v490 = vld [vmem:[%s449 + $0x140] sm:$0xff]
  %v491 = vld [vmem:[%s449 + $0x148] sm:$0xff]
  %v492 = vld [vmem:[%s449 + $0x150] sm:$0xff]
  %v493 = vld [vmem:[%s449 + $0x158] sm:$0xff]
  %v494 = vld [vmem:[%s449 + $0x160] sm:$0xff]
  %v495 = vld [vmem:[%s449 + $0x168] sm:$0xff]
  %v496 = vld [vmem:[%s449 + $0x170] sm:$0xff]
  %v497 = vld [vmem:[%s449 + $0x178] sm:$0xff]
  %v498 = vld [vmem:[%s449 + $0x180] sm:$0xff]
  %v499 = vld [vmem:[%s449 + $0x188] sm:$0xff]
  %v500 = vld [vmem:[%s449 + $0x190] sm:$0xff]
  %v501 = vld [vmem:[%s449 + $0x198] sm:$0xff]
  %v502 = vld [vmem:[%s449 + $0x1a0] sm:$0xff]
  %v503 = vld [vmem:[%s449 + $0x1a8] sm:$0xff]
  %v504 = vld [vmem:[%s449 + $0x1b0] sm:$0xff]
  %v505 = vld [vmem:[%s449 + $0x1b8] sm:$0xff]
  %v506 = vld [vmem:[%s449 + $0x1c0] sm:$0xff]
  %v507 = vld [vmem:[%s449 + $0x1c8] sm:$0xff]
  %v508 = vld [vmem:[%s449 + $0x1d0] sm:$0xff]
  %v509 = vld [vmem:[%s449 + $0x1d8] sm:$0xff]
  %v510 = vld [vmem:[%s449 + $0x1e0] sm:$0xff]
  %v511 = vld [vmem:[%s449 + $0x1e8] sm:$0xff]
  %v512 = vld [vmem:[%s449 + $0x1f0] sm:$0xff]
  %v513 = vld [vmem:[%s449 + $0x1f8] sm:$0xff]
  %514 = vmatprep.subr.mxu0 %v451
  %515 = vmatpush1.msra.mxu0 %v450
  %516 = vmatprep.subr.mxu0 %v453
  %517 = vmatpush1.msra.mxu0 %v452
  %518 = vmatprep.subr.mxu0 %v455
  %519 = vmatpush1.msra.mxu0 %v454
  %520 = vmatprep.subr.mxu0 %v457
  %521 = vmatpush1.msra.mxu0 %v456
  %522 = vmatprep.subr.mxu0 %v459
  %523 = vmatpush1.msra.mxu0 %v458
  %524 = vmatprep.subr.mxu0 %v461
  %525 = vmatpush1.msra.mxu0 %v460
  %526 = vmatprep.subr.mxu0 %v463
  %527 = vmatpush1.msra.mxu0 %v462
  %528 = vmatprep.subr.mxu0 %v465
  %529 = vmatpush1.msra.mxu0 %v464
  %530 = vmatprep.subr.mxu0 %v467
  %531 = vmatpush1.msra.mxu0 %v466
  %532 = vmatprep.subr.mxu0 %v469
  %533 = vmatpush1.msra.mxu0 %v468
  %534 = vmatprep.subr.mxu0 %v471
  %535 = vmatpush1.msra.mxu0 %v470
  %536 = vmatprep.subr.mxu0 %v473
  %537 = vmatpush1.msra.mxu0 %v472
  %538 = vmatprep.subr.mxu0 %v475
  %539 = vmatpush1.msra.mxu0 %v474
  %540 = vmatprep.subr.mxu0 %v477
  %541 = vmatpush1.msra.mxu0 %v476
  %542 = vmatprep.subr.mxu0 %v479
  %543 = vmatpush1.msra.mxu0 %v478
  %544 = vmatprep.subr.mxu0 %v481
  %545 = vmatpush1.msra.mxu0 %v480
  %546 = vmatprep.subr.mxu0 %v483
  %547 = vmatpush1.msra.mxu0 %v482
  %548 = vmatprep.subr.mxu0 %v485
  %549 = vmatpush1.msra.mxu0 %v484
  %550 = vmatprep.subr.mxu0 %v487
  %551 = vmatpush1.msra.mxu0 %v486
  %552 = vmatprep.subr.mxu0 %v489
  %553 = vmatpush1.msra.mxu0 %v488
  %554 = vmatprep.subr.mxu0 %v491
  %555 = vmatpush1.msra.mxu0 %v490
  %556 = vmatprep.subr.mxu0 %v493
  %557 = vmatpush1.msra.mxu0 %v492
  %558 = vmatprep.subr.mxu0 %v495
  %559 = vmatpush1.msra.mxu0 %v494
  %560 = vmatprep.subr.mxu0 %v497
  %561 = vmatpush1.msra.mxu0 %v496
  %562 = vmatprep.subr.mxu0 %v499
  %563 = vmatpush1.msra.mxu0 %v498
  %564 = vmatprep.subr.mxu0 %v501
  %565 = vmatpush1.msra.mxu0 %v500
  %566 = vmatprep.subr.mxu0 %v503
  %567 = vmatpush1.msra.mxu0 %v502
  %568 = vmatprep.subr.mxu0 %v505
  %569 = vmatpush1.msra.mxu0 %v504
  %570 = vmatprep.subr.mxu0 %v507
  %571 = vmatpush1.msra.mxu0 %v506
  %572 = vmatprep.subr.mxu0 %v509
  %573 = vmatpush1.msra.mxu0 %v508
  %574 = vmatprep.subr.mxu0 %v511
  %575 = vmatpush1.msra.mxu0 %v510
  %576 = vmatprep.subr.mxu0 %v513
  %577 = vmatpush1.msra.mxu0 %v512
  %578 = vmatprep.mubr.f32.mxu0 %v24
  %579 = vmatmul.mubr.f32.gmra.mrb[0].mxu0 %v23
  %v580 = vpop.f32.mrb[0].mxu0
  %v581 = vadd.f32 0.0, %v580
  %v582 = vpop.f32.mrb[0].mxu0
  %v583 = vadd.f32 0.0, %v582
  %584 = vdwg.mxu0
  %585 = vst [vmem:[#allocation2 + $0x40] sm:$0xff] %v581
  %586 = vst [vmem:[#allocation2 + $0x48] sm:$0xff] %v583
  %587 = vmatprep.subr.mxu0 %v451
  %588 = vmatpush1.msra.mxu0 %v450
  %589 = vmatprep.subr.mxu0 %v453
  %590 = vmatpush1.msra.mxu0 %v452
  %591 = vmatprep.subr.mxu0 %v455
  %592 = vmatpush1.msra.mxu0 %v454
  %593 = vmatprep.subr.mxu0 %v457
  %594 = vmatpush1.msra.mxu0 %v456
  %595 = vmatprep.subr.mxu0 %v459
  %596 = vmatpush1.msra.mxu0 %v458
  %597 = vmatprep.subr.mxu0 %v461
  %598 = vmatpush1.msra.mxu0 %v460
  %599 = vmatprep.subr.mxu0 %v463
  %600 = vmatpush1.msra.mxu0 %v462
  %601 = vmatprep.subr.mxu0 %v465
  %602 = vmatpush1.msra.mxu0 %v464
  %603 = vmatprep.subr.mxu0 %v467
  %604 = vmatpush1.msra.mxu0 %v466
  %605 = vmatprep.subr.mxu0 %v469
  %606 = vmatpush1.msra.mxu0 %v468
  %607 = vmatprep.subr.mxu0 %v471
  %608 = vmatpush1.msra.mxu0 %v470
  %609 = vmatprep.subr.mxu0 %v473
  %610 = vmatpush1.msra.mxu0 %v472
  %611 = vmatprep.subr.mxu0 %v475
  %612 = vmatpush1.msra.mxu0 %v474
  %613 = vmatprep.subr.mxu0 %v477
  %614 = vmatpush1.msra.mxu0 %v476
  %615 = vmatprep.subr.mxu0 %v479
  %616 = vmatpush1.msra.mxu0 %v478
  %617 = vmatprep.subr.mxu0 %v481
  %618 = vmatpush1.msra.mxu0 %v480
  %619 = vmatprep.subr.mxu0 %v483
  %620 = vmatpush1.msra.mxu0 %v482
  %621 = vmatprep.subr.mxu0 %v485
  %622 = vmatpush1.msra.mxu0 %v484
  %623 = vmatprep.subr.mxu0 %v487
  %624 = vmatpush1.msra.mxu0 %v486
  %625 = vmatprep.subr.mxu0 %v489
  %626 = vmatpush1.msra.mxu0 %v488
  %627 = vmatprep.subr.mxu0 %v491
  %628 = vmatpush1.msra.mxu0 %v490
  %629 = vmatprep.subr.mxu0 %v493
  %630 = vmatpush1.msra.mxu0 %v492
  %631 = vmatprep.subr.mxu0 %v495
  %632 = vmatpush1.msra.mxu0 %v494
  %633 = vmatprep.subr.mxu0 %v497
  %634 = vmatpush1.msra.mxu0 %v496
  %635 = vmatprep.subr.mxu0 %v499
  %636 = vmatpush1.msra.mxu0 %v498
  %637 = vmatprep.subr.mxu0 %v501
  %638 = vmatpush1.msra.mxu0 %v500
  %639 = vmatprep.subr.mxu0 %v503
  %640 = vmatpush1.msra.mxu0 %v502
  %641 = vmatprep.subr.mxu0 %v505
  %642 = vmatpush1.msra.mxu0 %v504
  %643 = vmatprep.subr.mxu0 %v507
  %644 = vmatpush1.msra.mxu0 %v506
  %645 = vmatprep.subr.mxu0 %v509
  %646 = vmatpush1.msra.mxu0 %v508
  %647 = vmatprep.subr.mxu0 %v511
  %648 = vmatpush1.msra.mxu0 %v510
  %649 = vmatprep.subr.mxu0 %v513
  %650 = vmatpush1.msra.mxu0 %v512
  %651 = vmatprep.mubr.f32.mxu0 %v26
  %652 = vmatmul.mubr.f32.gmra.mrb[0].mxu0 %v25
  %v653 = vpop.f32.mrb[0].mxu0
  %v654 = vadd.f32 0.0, %v653
  %v655 = vpop.f32.mrb[0].mxu0
  %v656 = vadd.f32 0.0, %v655
  %657 = vdwg.mxu0
  %658 = vst [vmem:[#allocation2 + $0x50] sm:$0xff] %v654
  %659 = vst [vmem:[#allocation2 + $0x58] sm:$0xff] %v656
  %v660 = vld [vmem:[%s2] sm:$0xff]
  %v661 = vld [vmem:[#allocation2] sm:$0xff]
  %v662 = vld [vmem:[#allocation2 + $0x8] sm:$0xff]
  %v663 = vld [vmem:[#allocation2 + $0x10] sm:$0xff]
  %v664 = vld [vmem:[#allocation2 + $0x18] sm:$0xff]
  %v665 = vld [vmem:[#allocation2 + $0x20] sm:$0xff]
  %v666 = vld [vmem:[#allocation2 + $0x28] sm:$0xff]
  %v667 = vld [vmem:[#allocation2 + $0x30] sm:$0xff]
  %v668 = vld [vmem:[#allocation2 + $0x38] sm:$0xff]
  %v669 = vld [vmem:[#allocation2 + $0x40] sm:$0xff]
  %v670 = vld [vmem:[#allocation2 + $0x48] sm:$0xff]
  %v671 = vld [vmem:[#allocation2 + $0x50] sm:$0xff]
  %v672 = vld [vmem:[#allocation2 + $0x58] sm:$0xff]
  %674 = vset.pattern.permute.xlu0 0
  %675 = vperm.xlu0 %674, %v27
  %v676 = vpop.permute.xlu0 %675
  %vm678 = vcmask 195584
  %v680 = vsel %vm678, %v660, 0
  %682 = vmatprep.subr.mxu0 %v662
  %683 = vmatpush1.msra.mxu0 %v661
  %684 = vmatprep.subr.mxu0 %v666
  %685 = vmatpush1.msra.mxu0 %v665
  %686 = vmatprep.subr.mxu0 %v670
  %687 = vmatpush1.msra.mxu0 %v669
  %688 = vmatprep.subr.mxu0 0.0
  %689 = vmatpush1.msra.mxu0 0.0
  %690 = vmatprep.subr.mxu0 0.0
  %691 = vmatpush1.msra.mxu0 0.0
  %692 = vmatprep.subr.mxu0 0.0
  %693 = vmatpush1.msra.mxu0 0.0
  %694 = vmatprep.subr.mxu0 0.0
  %695 = vmatpush1.msra.mxu0 0.0
  %696 = vmatprep.subr.mxu0 0.0
  %697 = vmatpush1.msra.mxu0 0.0
  %698 = vmatprep.subr.mxu0 0.0
  %699 = vmatpush1.msra.mxu0 0.0
  %700 = vmatprep.subr.mxu0 0.0
  %701 = vmatpush1.msra.mxu0 0.0
  %702 = vmatprep.subr.mxu0 0.0
  %703 = vmatpush1.msra.mxu0 0.0
  %704 = vmatprep.subr.mxu0 0.0
  %705 = vmatpush1.msra.mxu0 0.0
  %706 = vmatprep.subr.mxu0 0.0
  %707 = vmatpush1.msra.mxu0 0.0
  %708 = vmatprep.subr.mxu0 0.0
  %709 = vmatpush1.msra.mxu0 0.0
  %710 = vmatprep.subr.mxu0 0.0
  %711 = vmatpush1.msra.mxu0 0.0
  %712 = vmatprep.subr.mxu0 0.0
  %713 = vmatpush1.msra.mxu0 0.0
  %714 = vmatprep.subr.mxu0 0.0
  %715 = vmatpush1.msra.mxu0 0.0
  %716 = vmatprep.subr.mxu0 0.0
  %717 = vmatpush1.msra.mxu0 0.0
  %718 = vmatprep.subr.mxu0 0.0
  %719 = vmatpush1.msra.mxu0 0.0
  %720 = vmatprep.subr.mxu0 0.0
  %721 = vmatpush1.msra.mxu0 0.0
  %722 = vmatprep.subr.mxu0 0.0
  %723 = vmatpush1.msra.mxu0 0.0
  %724 = vmatprep.subr.mxu0 0.0
  %725 = vmatpush1.msra.mxu0 0.0
  %726 = vmatprep.subr.mxu0 0.0
  %727 = vmatpush1.msra.mxu0 0.0
  %728 = vmatprep.subr.mxu0 0.0
  %729 = vmatpush1.msra.mxu0 0.0
  %730 = vmatprep.subr.mxu0 0.0
  %731 = vmatpush1.msra.mxu0 0.0
  %732 = vmatprep.subr.mxu0 0.0
  %733 = vmatpush1.msra.mxu0 0.0
  %734 = vmatprep.subr.mxu0 0.0
  %735 = vmatpush1.msra.mxu0 0.0
  %736 = vmatprep.subr.mxu0 0.0
  %737 = vmatpush1.msra.mxu0 0.0
  %738 = vmatprep.subr.mxu0 0.0
  %739 = vmatpush1.msra.mxu0 0.0
  %740 = vmatprep.subr.mxu0 0.0
  %741 = vmatpush1.msra.mxu0 0.0
  %742 = vmatprep.subr.mxu0 0.0
  %743 = vmatpush1.msra.mxu0 0.0
  %744 = vmatprep.subr.mxu0 0.0
  %745 = vmatpush1.msra.mxu0 0.0
  %746 = vmatprep.mubr.f32.mxu0 0.0
  %747 = vmatmul.mubr.f32.gmra.mrb[0].mxu0 %v680
  %v748 = vpop.f32.mrb[0].mxu0
  %v749 = vadd.f32 %v676, %v748
  %v750 = vpop.f32.mrb[0].mxu0
  %v751 = vadd.f32 %v676, %v750
  %752 = vdwg.mxu0
  %753 = vmatprep.subr.mxu0 %v664
  %754 = vmatpush1.msra.mxu0 %v663
  %755 = vmatprep.subr.mxu0 %v668
  %756 = vmatpush1.msra.mxu0 %v667
  %757 = vmatprep.subr.mxu0 %v672
  %758 = vmatpush1.msra.mxu0 %v671
  %759 = vmatprep.subr.mxu0 0.0
  %760 = vmatpush1.msra.mxu0 0.0
  %761 = vmatprep.subr.mxu0 0.0
  %762 = vmatpush1.msra.mxu0 0.0
  %763 = vmatprep.subr.mxu0 0.0
  %764 = vmatpush1.msra.mxu0 0.0
  %765 = vmatprep.subr.mxu0 0.0
  %766 = vmatpush1.msra.mxu0 0.0
  %767 = vmatprep.subr.mxu0 0.0
  %768 = vmatpush1.msra.mxu0 0.0
  %769 = vmatprep.subr.mxu0 0.0
  %770 = vmatpush1.msra.mxu0 0.0
  %771 = vmatprep.subr.mxu0 0.0
  %772 = vmatpush1.msra.mxu0 0.0
  %773 = vmatprep.subr.mxu0 0.0
  %774 = vmatpush1.msra.mxu0 0.0
  %775 = vmatprep.subr.mxu0 0.0
  %776 = vmatpush1.msra.mxu0 0.0
  %777 = vmatprep.subr.mxu0 0.0
  %778 = vmatpush1.msra.mxu0 0.0
  %779 = vmatprep.subr.mxu0 0.0
  %780 = vmatpush1.msra.mxu0 0.0
  %781 = vmatprep.subr.mxu0 0.0
  %782 = vmatpush1.msra.mxu0 0.0
  %783 = vmatprep.subr.mxu0 0.0
  %784 = vmatpush1.msra.mxu0 0.0
  %785 = vmatprep.subr.mxu0 0.0
  %786 = vmatpush1.msra.mxu0 0.0
  %787 = vmatprep.subr.mxu0 0.0
  %788 = vmatpush1.msra.mxu0 0.0
  %789 = vmatprep.subr.mxu0 0.0
  %790 = vmatpush1.msra.mxu0 0.0
  %791 = vmatprep.subr.mxu0 0.0
  %792 = vmatpush1.msra.mxu0 0.0
  %793 = vmatprep.subr.mxu0 0.0
  %794 = vmatpush1.msra.mxu0 0.0
  %795 = vmatprep.subr.mxu0 0.0
  %796 = vmatpush1.msra.mxu0 0.0
  %797 = vmatprep.subr.mxu0 0.0
  %798 = vmatpush1.msra.mxu0 0.0
  %799 = vmatprep.subr.mxu0 0.0
  %800 = vmatpush1.msra.mxu0 0.0
  %801 = vmatprep.subr.mxu0 0.0
  %802 = vmatpush1.msra.mxu0 0.0
  %803 = vmatprep.subr.mxu0 0.0
  %804 = vmatpush1.msra.mxu0 0.0
  %805 = vmatprep.subr.mxu0 0.0
  %806 = vmatpush1.msra.mxu0 0.0
  %807 = vmatprep.subr.mxu0 0.0
  %808 = vmatpush1.msra.mxu0 0.0
  %809 = vmatprep.subr.mxu0 0.0
  %810 = vmatpush1.msra.mxu0 0.0
  %811 = vmatprep.subr.mxu0 0.0
  %812 = vmatpush1.msra.mxu0 0.0
  %813 = vmatprep.subr.mxu0 0.0
  %814 = vmatpush1.msra.mxu0 0.0
  %815 = vmatprep.subr.mxu0 0.0
  %816 = vmatpush1.msra.mxu0 0.0
  %817 = vmatprep.mubr.f32.mxu0 0.0
  %818 = vmatmul.mubr.f32.gmra.mrb[0].mxu0 %v680
  %v819 = vpop.f32.mrb[0].mxu0
  %v820 = vadd.f32 %v676, %v819
  %v821 = vpop.f32.mrb[0].mxu0
  %v822 = vadd.f32 %v676, %v821
  %823 = vdwg.mxu0
  %v824 = vmax.f32 %v749, 0.0
  %v825 = vmax.f32 %v751, 0.0
  %v826 = vmax.f32 %v820, 0.0
  %v827 = vmax.f32 %v822, 0.0
  %828 = vrot.lane.b32.xlu0 %v824, 32
  %v829 = vpop.permute.xlu0 %828
  %830 = vrot.lane.b32.xlu0 %v825, 32
  %v831 = vpop.permute.xlu0 %830
  %832 = vrot.lane.b32.xlu0 %v826, 32
  %v833 = vpop.permute.xlu0 %832
  %834 = vrot.lane.b32.xlu0 %v827, 32
  %v835 = vpop.permute.xlu0 %834
  %v836 = vlaneseq
  %v837 = vand.u32 %v836, 127
  %vm838 = vcmp.lt.s32.totalorder %v837, 32
  %v839 = vsel %vm838, %v833, %v835
  %v840 = vsel %vm838, %v831, %v833
  %v841 = vsel %vm838, %v829, %v831
  %v842 = vsel %vm838, %v835, %v829
  %v843 = vld [vmem:[%s5] ss:$8 sm:$0xf]
  %v845 = vlaneseq
  %v846 = vshrl.u32 %v845, 7
  %v847 = vsub.s32 0, %v846
  %v848 = vrot.slane %v843, %v847
  %v849 = vlaneseq
  %v850 = vshrl.u32 %v849, 7
  %v851 = vsub.s32 1, %v850
  %v852 = vrot.slane %v843, %v851
  %v853 = vlaneseq
  %v854 = vshrl.u32 %v853, 7
  %v855 = vsub.s32 2, %v854
  %v856 = vrot.slane %v843, %v855
  %v857 = vlaneseq
  %v858 = vshrl.u32 %v857, 7
  %v859 = vsub.s32 3, %v858
  %v860 = vrot.slane %v843, %v859
  %v865 = vmul.f32 %v842, %v848
  %v866 = vmul.f32 %v841, %v852
  %v867 = vmul.f32 %v840, %v856
  %v868 = vmul.f32 %v839, %v860
  %869 = vst [vmem:[#allocation3] sm:$0xff] %v865
  %870 = vst [vmem:[#allocation3 + $0x8] sm:$0xff] %v866
  %871 = vst [vmem:[#allocation3 + $0x10] sm:$0xff] %v867
  %872 = vst [vmem:[#allocation3 + $0x18] sm:$0xff] %v868
  %873 = vrot.lane.b32.xlu0 %v824, 16
  %v874 = vpop.permute.xlu0 %873
  %875 = vrot.lane.b32.xlu0 %v825, 16
  %v876 = vpop.permute.xlu0 %875
  %877 = vrot.lane.b32.xlu0 %v826, 16
  %v878 = vpop.permute.xlu0 %877
  %879 = vrot.lane.b32.xlu0 %v827, 16
  %v880 = vpop.permute.xlu0 %879
  %vm881 = vcmp.lt.s32.totalorder %v837, 16
  %v882 = vsel %vm881, %v878, %v880
  %v883 = vsel %vm881, %v876, %v878
  %v884 = vsel %vm881, %v874, %v876
  %v885 = vsel %vm881, %v880, %v874
  %s886 = scalar_lea.vmem %s5, 1
  %v887 = vld [vmem:[%s886] ss:$8 sm:$0xf]
  %v889 = vlaneseq
  %v890 = vshrl.u32 %v889, 7
  %v891 = vsub.s32 0, %v890
  %v892 = vrot.slane %v887, %v891
  %v893 = vlaneseq
  %v894 = vshrl.u32 %v893, 7
  %v895 = vsub.s32 1, %v894
  %v896 = vrot.slane %v887, %v895
  %v897 = vlaneseq
  %v898 = vshrl.u32 %v897, 7
  %v899 = vsub.s32 2, %v898
  %v900 = vrot.slane %v887, %v899
  %v901 = vlaneseq
  %v902 = vshrl.u32 %v901, 7
  %v903 = vsub.s32 3, %v902
  %v904 = vrot.slane %v887, %v903
  %v909 = vmul.f32 %v885, %v892
  %v910 = vmul.f32 %v884, %v896
  %v911 = vmul.f32 %v883, %v900
  %v912 = vmul.f32 %v882, %v904
  %913 = vst [vmem:[#allocation3 + $0x20] sm:$0xff] %v909
  %914 = vst [vmem:[#allocation3 + $0x28] sm:$0xff] %v910
  %915 = vst [vmem:[#allocation3 + $0x30] sm:$0xff] %v911
  %916 = vst [vmem:[#allocation3 + $0x38] sm:$0xff] %v912
  %917 = vst [vmem:[#allocation3 + $0x40] sm:$0xff] %v824
  %918 = vst [vmem:[#allocation3 + $0x48] sm:$0xff] %v825
  %919 = vst [vmem:[#allocation3 + $0x50] sm:$0xff] %v826
  %920 = vst [vmem:[#allocation3 + $0x58] sm:$0xff] %v827
  %921 = vrot.lane.b32.xlu0 %v824, 112
  %v922 = vpop.permute.xlu0 %921
  %923 = vrot.lane.b32.xlu0 %v825, 112
  %v924 = vpop.permute.xlu0 %923
  %925 = vrot.lane.b32.xlu0 %v826, 112
  %v926 = vpop.permute.xlu0 %925
  %927 = vrot.lane.b32.xlu0 %v827, 112
  %v928 = vpop.permute.xlu0 %927
  %vm929 = vcmp.lt.s32.totalorder %v837, 112
  %v930 = vsel %vm929, %v926, %v928
  %v931 = vsel %vm929, %v924, %v926
  %v932 = vsel %vm929, %v922, %v924
  %v933 = vsel %vm929, %v928, %v922
  %s934 = scalar_lea.vmem %s5, 3
  %v935 = vld [vmem:[%s934] ss:$8 sm:$0xf]
  %v937 = vlaneseq
  %v938 = vshrl.u32 %v937, 7
  %v939 = vsub.s32 0, %v938
  %v940 = vrot.slane %v935, %v939
  %v941 = vlaneseq
  %v942 = vshrl.u32 %v941, 7
  %v943 = vsub.s32 1, %v942
  %v944 = vrot.slane %v935, %v943
  %v945 = vlaneseq
  %v946 = vshrl.u32 %v945, 7
  %v947 = vsub.s32 2, %v946
  %v948 = vrot.slane %v935, %v947
  %v949 = vlaneseq
  %v950 = vshrl.u32 %v949, 7
  %v951 = vsub.s32 3, %v950
  %v952 = vrot.slane %v935, %v951
  %v957 = vmul.f32 %v932, %v940
  %v958 = vmul.f32 %v931, %v944
  %v959 = vmul.f32 %v930, %v948
  %v960 = vmul.f32 %v933, %v952
  %961 = vst [vmem:[#allocation3 + $0x60] sm:$0xff] %v957
  %962 = vst [vmem:[#allocation3 + $0x68] sm:$0xff] %v958
  %963 = vst [vmem:[#allocation3 + $0x70] sm:$0xff] %v959
  %964 = vst [vmem:[#allocation3 + $0x78] sm:$0xff] %v960
  %965 = vrot.lane.b32.xlu0 %v824, 96
  %v966 = vpop.permute.xlu0 %965
  %967 = vrot.lane.b32.xlu0 %v825, 96
  %v968 = vpop.permute.xlu0 %967
  %969 = vrot.lane.b32.xlu0 %v826, 96
  %v970 = vpop.permute.xlu0 %969
  %971 = vrot.lane.b32.xlu0 %v827, 96
  %v972 = vpop.permute.xlu0 %971
  %vm973 = vcmp.lt.s32.totalorder %v837, 96
  %v974 = vsel %vm973, %v970, %v972
  %v975 = vsel %vm973, %v968, %v970
  %v976 = vsel %vm973, %v966, %v968
  %v977 = vsel %vm973, %v972, %v966
  %s978 = scalar_lea.vmem %s5, 4
  %v979 = vld [vmem:[%s978] ss:$8 sm:$0xf]
  %v981 = vlaneseq
  %v982 = vshrl.u32 %v981, 7
  %v983 = vsub.s32 0, %v982
  %v984 = vrot.slane %v979, %v983
  %v985 = vlaneseq
  %v986 = vshrl.u32 %v985, 7
  %v987 = vsub.s32 1, %v986
  %v988 = vrot.slane %v979, %v987
  %v989 = vlaneseq
  %v990 = vshrl.u32 %v989, 7
  %v991 = vsub.s32 2, %v990
  %v992 = vrot.slane %v979, %v991
  %v993 = vlaneseq
  %v994 = vshrl.u32 %v993, 7
  %v995 = vsub.s32 3, %v994
  %v996 = vrot.slane %v979, %v995
  %v1001 = vmul.f32 %v976, %v984
  %v1002 = vmul.f32 %v975, %v988
  %v1003 = vmul.f32 %v974, %v992
  %v1004 = vmul.f32 %v977, %v996
  %1005 = vst [vmem:[#allocation3 + $0x80] sm:$0xff] %v1001
  %1006 = vst [vmem:[#allocation3 + $0x88] sm:$0xff] %v1002
  %1007 = vst [vmem:[#allocation3 + $0x90] sm:$0xff] %v1003
  %1008 = vst [vmem:[#allocation3 + $0x98] sm:$0xff] %v1004
  %1009 = vst [vmem:[#allocation3 + $0xa0] sm:$0xff] %v23
  %1010 = vst [vmem:[#allocation3 + $0xa8] sm:$0xff] %v24
  %1011 = vst [vmem:[#allocation3 + $0xb0] sm:$0xff] %v25
  %1012 = vst [vmem:[#allocation3 + $0xb8] sm:$0xff] %v26
  %v1013 = vld [vmem:[%s3] sm:$0xff]
  %v1014 = vld [vmem:[#allocation3] sm:$0xff]
  %v1015 = vld [vmem:[#allocation3 + $0x8] sm:$0xff]
  %v1016 = vld [vmem:[#allocation3 + $0x10] sm:$0xff]
  %v1017 = vld [vmem:[#allocation3 + $0x18] sm:$0xff]
  %v1018 = vld [vmem:[#allocation3 + $0x20] sm:$0xff]
  %v1019 = vld [vmem:[#allocation3 + $0x28] sm:$0xff]
  %v1020 = vld [vmem:[#allocation3 + $0x30] sm:$0xff]
  %v1021 = vld [vmem:[#allocation3 + $0x38] sm:$0xff]
  %v1022 = vld [vmem:[#allocation3 + $0x40] sm:$0xff]
  %v1023 = vld [vmem:[#allocation3 + $0x48] sm:$0xff]
  %v1024 = vld [vmem:[#allocation3 + $0x50] sm:$0xff]
  %v1025 = vld [vmem:[#allocation3 + $0x58] sm:$0xff]
  %v1026 = vld [vmem:[#allocation3 + $0x60] sm:$0xff]
  %v1027 = vld [vmem:[#allocation3 + $0x68] sm:$0xff]
  %v1028 = vld [vmem:[#allocation3 + $0x70] sm:$0xff]
  %v1029 = vld [vmem:[#allocation3 + $0x78] sm:$0xff]
  %v1030 = vld [vmem:[#allocation3 + $0x80] sm:$0xff]
  %v1031 = vld [vmem:[#allocation3 + $0x88] sm:$0xff]
  %v1032 = vld [vmem:[#allocation3 + $0x90] sm:$0xff]
  %v1033 = vld [vmem:[#allocation3 + $0x98] sm:$0xff]
  %v1034 = vld [vmem:[#allocation3 + $0xa0] sm:$0xff]
  %v1035 = vld [vmem:[#allocation3 + $0xa8] sm:$0xff]
  %v1036 = vld [vmem:[#allocation3 + $0xb0] sm:$0xff]
  %v1037 = vld [vmem:[#allocation3 + $0xb8] sm:$0xff]
  %1038 = vset.pattern.permute.xlu0 1
  %1039 = vperm.xlu0 %1038, %v27
  %v1040 = vpop.permute.xlu0 %1039
  %vm1042 = vcmask 392192
  %v1044 = vsel %vm1042, %v1013, 0
  %1046 = vmatprep.subr.mxu0 %v1015
  %1047 = vmatpush1.msra.mxu0 %v1014
  %1048 = vmatprep.subr.mxu0 %v1019
  %1049 = vmatpush1.msra.mxu0 %v1018
  %1050 = vmatprep.subr.mxu0 %v1023
  %1051 = vmatpush1.msra.mxu0 %v1022
  %1052 = vmatprep.subr.mxu0 %v1027
  %1053 = vmatpush1.msra.mxu0 %v1026
  %1054 = vmatprep.subr.mxu0 %v1031
  %1055 = vmatpush1.msra.mxu0 %v1030
  %1056 = vmatprep.subr.mxu0 %v1035
  %1057 = vmatpush1.msra.mxu0 %v1034
  %1058 = vmatprep.subr.mxu0 0.0
  %1059 = vmatpush1.msra.mxu0 0.0
  %1060 = vmatprep.subr.mxu0 0.0
  %1061 = vmatpush1.msra.mxu0 0.0
  %1062 = vmatprep.subr.mxu0 0.0
  %1063 = vmatpush1.msra.mxu0 0.0
  %1064 = vmatprep.subr.mxu0 0.0
  %1065 = vmatpush1.msra.mxu0 0.0
  %1066 = vmatprep.subr.mxu0 0.0
  %1067 = vmatpush1.msra.mxu0 0.0
  %1068 = vmatprep.subr.mxu0 0.0
  %1069 = vmatpush1.msra.mxu0 0.0
  %1070 = vmatprep.subr.mxu0 0.0
  %1071 = vmatpush1.msra.mxu0 0.0
  %1072 = vmatprep.subr.mxu0 0.0
  %1073 = vmatpush1.msra.mxu0 0.0
  %1074 = vmatprep.subr.mxu0 0.0
  %1075 = vmatpush1.msra.mxu0 0.0
  %1076 = vmatprep.subr.mxu0 0.0
  %1077 = vmatpush1.msra.mxu0 0.0
  %1078 = vmatprep.subr.mxu0 0.0
  %1079 = vmatpush1.msra.mxu0 0.0
  %1080 = vmatprep.subr.mxu0 0.0
  %1081 = vmatpush1.msra.mxu0 0.0
  %1082 = vmatprep.subr.mxu0 0.0
  %1083 = vmatpush1.msra.mxu0 0.0
  %1084 = vmatprep.subr.mxu0 0.0
  %1085 = vmatpush1.msra.mxu0 0.0
  %1086 = vmatprep.subr.mxu0 0.0
  %1087 = vmatpush1.msra.mxu0 0.0
  %1088 = vmatprep.subr.mxu0 0.0
  %1089 = vmatpush1.msra.mxu0 0.0
  %1090 = vmatprep.subr.mxu0 0.0
  %1091 = vmatpush1.msra.mxu0 0.0
  %1092 = vmatprep.subr.mxu0 0.0
  %1093 = vmatpush1.msra.mxu0 0.0
  %1094 = vmatprep.subr.mxu0 0.0
  %1095 = vmatpush1.msra.mxu0 0.0
  %1096 = vmatprep.subr.mxu0 0.0
  %1097 = vmatpush1.msra.mxu0 0.0
  %1098 = vmatprep.subr.mxu0 0.0
  %1099 = vmatpush1.msra.mxu0 0.0
  %1100 = vmatprep.subr.mxu0 0.0
  %1101 = vmatpush1.msra.mxu0 0.0
  %1102 = vmatprep.subr.mxu0 0.0
  %1103 = vmatpush1.msra.mxu0 0.0
  %1104 = vmatprep.subr.mxu0 0.0
  %1105 = vmatpush1.msra.mxu0 0.0
  %1106 = vmatprep.subr.mxu0 0.0
  %1107 = vmatpush1.msra.mxu0 0.0
  %1108 = vmatprep.subr.mxu0 0.0
  %1109 = vmatpush1.msra.mxu0 0.0
  %1110 = vmatprep.mubr.f32.mxu0 0.0
  %1111 = vmatmul.mubr.f32.gmra.mrb[0].mxu0 %v1044
  %v1112 = vpop.f32.mrb[0].mxu0
  %v1113 = vadd.f32 %v1040, %v1112
  %v1114 = vpop.f32.mrb[0].mxu0
  %v1115 = vadd.f32 %v1040, %v1114
  %1116 = vdwg.mxu0
  %1117 = vmatprep.subr.mxu0 %v1017
  %1118 = vmatpush1.msra.mxu0 %v1016
  %1119 = vmatprep.subr.mxu0 %v1021
  %1120 = vmatpush1.msra.mxu0 %v1020
  %1121 = vmatprep.subr.mxu0 %v1025
  %1122 = vmatpush1.msra.mxu0 %v1024
  %1123 = vmatprep.subr.mxu0 %v1029
  %1124 = vmatpush1.msra.mxu0 %v1028
  %1125 = vmatprep.subr.mxu0 %v1033
  %1126 = vmatpush1.msra.mxu0 %v1032
  %1127 = vmatprep.subr.mxu0 %v1037
  %1128 = vmatpush1.msra.mxu0 %v1036
  %1129 = vmatprep.subr.mxu0 0.0
  %1130 = vmatpush1.msra.mxu0 0.0
  %1131 = vmatprep.subr.mxu0 0.0
  %1132 = vmatpush1.msra.mxu0 0.0
  %1133 = vmatprep.subr.mxu0 0.0
  %1134 = vmatpush1.msra.mxu0 0.0
  %1135 = vmatprep.subr.mxu0 0.0
  %1136 = vmatpush1.msra.mxu0 0.0
  %1137 = vmatprep.subr.mxu0 0.0
  %1138 = vmatpush1.msra.mxu0 0.0
  %1139 = vmatprep.subr.mxu0 0.0
  %1140 = vmatpush1.msra.mxu0 0.0
  %1141 = vmatprep.subr.mxu0 0.0
  %1142 = vmatpush1.msra.mxu0 0.0
  %1143 = vmatprep.subr.mxu0 0.0
  %1144 = vmatpush1.msra.mxu0 0.0
  %1145 = vmatprep.subr.mxu0 0.0
  %1146 = vmatpush1.msra.mxu0 0.0
  %1147 = vmatprep.subr.mxu0 0.0
  %1148 = vmatpush1.msra.mxu0 0.0
  %1149 = vmatprep.subr.mxu0 0.0
  %1150 = vmatpush1.msra.mxu0 0.0
  %1151 = vmatprep.subr.mxu0 0.0
  %1152 = vmatpush1.msra.mxu0 0.0
  %1153 = vmatprep.subr.mxu0 0.0
  %1154 = vmatpush1.msra.mxu0 0.0
  %1155 = vmatprep.subr.mxu0 0.0
  %1156 = vmatpush1.msra.mxu0 0.0
  %1157 = vmatprep.subr.mxu0 0.0
  %1158 = vmatpush1.msra.mxu0 0.0
  %1159 = vmatprep.subr.mxu0 0.0
  %1160 = vmatpush1.msra.mxu0 0.0
  %1161 = vmatprep.subr.mxu0 0.0
  %1162 = vmatpush1.msra.mxu0 0.0
  %1163 = vmatprep.subr.mxu0 0.0
  %1164 = vmatpush1.msra.mxu0 0.0
  %1165 = vmatprep.subr.mxu0 0.0
  %1166 = vmatpush1.msra.mxu0 0.0
  %1167 = vmatprep.subr.mxu0 0.0
  %1168 = vmatpush1.msra.mxu0 0.0
  %1169 = vmatprep.subr.mxu0 0.0
  %1170 = vmatpush1.msra.mxu0 0.0
  %1171 = vmatprep.subr.mxu0 0.0
  %1172 = vmatpush1.msra.mxu0 0.0
  %1173 = vmatprep.subr.mxu0 0.0
  %1174 = vmatpush1.msra.mxu0 0.0
  %1175 = vmatprep.subr.mxu0 0.0
  %1176 = vmatpush1.msra.mxu0 0.0
  %1177 = vmatprep.subr.mxu0 0.0
  %1178 = vmatpush1.msra.mxu0 0.0
  %1179 = vmatprep.subr.mxu0 0.0
  %1180 = vmatpush1.msra.mxu0 0.0
  %1181 = vmatprep.mubr.f32.mxu0 0.0
  %1182 = vmatmul.mubr.f32.gmra.mrb[0].mxu0 %v1044
  %v1183 = vpop.f32.mrb[0].mxu0
  %v1184 = vadd.f32 %v1040, %v1183
  %v1185 = vpop.f32.mrb[0].mxu0
  %v1186 = vadd.f32 %v1040, %v1185
  %1187 = vdwg.mxu0
  %v1188 = vmax.f32 %v1113, 0.0
  %v1189 = vmax.f32 %v1115, 0.0
  %v1190 = vmax.f32 %v1184, 0.0
  %v1191 = vmax.f32 %v1186, 0.0
  %1192 = vst [vmem:[%s6] sm:$0xff] %v1188
  %1193 = vst [vmem:[%s6 + $0x8] sm:$0xff] %v1189
  %1194 = vst [vmem:[%s6 + $0x10] sm:$0xff] %v1190
  %1195 = vst [vmem:[%s6 + $0x18] sm:$0xff] %v1191
  // Predicated region
  $region26: #{st_gcn_block_hd_forward.1} parent=0 // pred_check
    _
  $region27: #{st_gcn_block_hd_forward.1} parent=0 // pred_check_branch
    %1197 = sbr.rel (0) target = $region29
  $region28: #{st_gcn_block_hd_forward.1} parent=0 // pred_region
    _
  $region29: #{st_gcn_block_hd_forward.1} parent=0 // pred_fallthru
    _
  // Predicated region
  $region30: #{st_gcn_block_hd_forward.1} parent=0 // pred_check
    _
  $region31: #{st_gcn_block_hd_forward.1} parent=0 // pred_check_branch
    %1199 = sbr.rel (0) target = $region33
  $region32: #{st_gcn_block_hd_forward.1} parent=0 // pred_region
    _
  $region33: #{st_gcn_block_hd_forward.1} parent=0 // pred_fallthru
    _

</llo_original>
